<compile_context>
chip_gen: v6e
topology: v6e:2x2x1
jax: 0.10.0
libtpu: 0.0.40
codegen_flags: <defaults>
</compile_context>

<pallas_src>
import jax
import jax.numpy as jnp
from jax.experimental import pallas as pl
from jax.experimental.pallas import tpu as pltpu


# --------------------------------------------------------------------------
# Fused Pallas kernel (one grid step = one batch tile)
# --------------------------------------------------------------------------
def _mckn_fused_kernel(x_ref, pooled_ref,
                       w_conv_ref, b_conv_ref, mask_ref,
                       w_state_ref, b_state_ref,
                       w1_ab_ref, w1_s_ref, g_b1_ref,
                       gf_w_ref, gf_b_ref,
                       o_w1_ref, o_b1_ref, o_w2_ref, o_b2_ref,
                       o_ref):
    NB, TB, Lp, E = x_ref.shape            # branches, batch tile, padded len, emb
    L = mask_ref.shape[1]                  # segment length (conv positions)
    Np = w_conv_ref.shape[1]               # 128-lane padded conv output width
    k_max = w_conv_ref.shape[0] // E
    SEG = w1_ab_ref.shape[1]               # n_kernels * n_filter
    crn = w1_ab_ref.shape[2]               # 4 * n_hidden
    f32 = jnp.float32

    x = x_ref[...]                                             # (NB, TB, Lp, E) bf16
    M = NB * TB * L

    # --- in-VMEM im2col: k_max shifted views concatenated along features ---
    cols = [x[:, :, j:j + L, :].reshape(M, E) for j in range(k_max)]
    slab = jnp.concatenate(cols, axis=-1)                      # (M, k_max*E)

    # --- all three TextCNN branch convs as ONE MXU matmul (bf16 in, f32 acc) ---
    h = jnp.dot(slab, w_conv_ref[...], preferred_element_type=f32)
    h = jnp.maximum(h + b_conv_ref[...], 0.0)                  # ReLU, (M, Np)

    # zero invalid conv positions (exact: post-ReLU >= 0) and max over time
    h = h.reshape(NB, TB, L, Np) * mask_ref[...][:, None, :, :]
    hmax = jnp.max(h, axis=2)                                  # (NB, TB, Np)

    y_pre = hmax[0, :, 0 * SEG:1 * SEG]                        # (TB, SEG)
    y_alt = hmax[1, :, 1 * SEG:2 * SEG]
    y_cur = hmax[2, :, 2 * SEG:3 * SEG]

    # TODO(synk): stand-in for the undefined y_state / gru_hidden (missing GRU):
    # tanh projection of the masked mean-pooled word embeddings.
    y_state = jnp.tanh(jnp.dot(pooled_ref[...], w_state_ref[...],
                               preferred_element_type=f32) + b_state_ref[...])

    # --- g_fc layer 1 without a pairs scratch: W1 split by input block,
    #     y_state projection shared across the 4 relational pairs ---
    seg1 = jnp.concatenate([y_pre, y_cur, y_pre, y_alt], axis=0)   # (4*TB, SEG)
    seg2 = jnp.concatenate([y_cur, y_pre, y_alt, y_cur], axis=0)   # (4*TB, SEG)
    s_proj = jnp.dot(y_state, w1_s_ref[...], preferred_element_type=f32)  # (TB, crn)
    s4 = jnp.concatenate([s_proj, s_proj, s_proj, s_proj], axis=0)        # (4*TB, crn)
    h1 = (jnp.dot(seg1, w1_ab_ref[0], preferred_element_type=f32)
          + jnp.dot(seg2, w1_ab_ref[1], preferred_element_type=f32)
          + s4 + g_b1_ref[...])
    h1 = jnp.maximum(h1, 0.0)                                      # (4*TB, crn)

    # --- g_fc layer 2 on all 4 pairs at once, then sum over pairs ---
    h2 = jnp.maximum(jnp.dot(h1, gf_w_ref[0], preferred_element_type=f32)
                     + gf_b_ref[0], 0.0)                           # (4*TB, crn)
    y_pair = jnp.sum(h2.reshape(4, TB, crn), axis=0)               # (TB, crn)

    # --- f_fc + out_fc (output lane-padded to 128; wrapper slices n_class) ---
    h3 = jnp.maximum(jnp.dot(y_pair, gf_w_ref[1], preferred_element_type=f32)
                     + gf_b_ref[1], 0.0)
    h4 = jnp.maximum(jnp.dot(h3, o_w1_ref[...], preferred_element_type=f32)
                     + o_b1_ref[...], 0.0)
    o_ref[...] = (jnp.dot(h4, o_w2_ref[...], preferred_element_type=f32)
                  + o_b2_ref[...])


# --------------------------------------------------------------------------
# Parameter construction (deterministic, synthetic)
# --------------------------------------------------------------------------
def sinusoid_pe(max_len, d):
    pos = jnp.arange(max_len, dtype=jnp.float32)[:, None]
    i = jnp.arange(d)[None, :]
    angle = pos / jnp.power(10000.0, (2.0 * (i // 2).astype(jnp.float32)) / d)
    return jnp.where(i % 2 == 0, jnp.sin(angle), jnp.cos(angle)).astype(jnp.float32)


def init_params(key, *, n_dict, n_emb, n_filter, n_kernels, n_hidden, n_class,
                max_len):
    keys = iter(jax.random.split(key, 64))

    def dense(shape, scale=0.1):
        return (scale * jax.random.normal(next(keys), shape)).astype(jnp.float32)

    gru_hidden = 2 * n_hidden           # TODO(synk): gru_hidden undefined in reference
    crn_hidden = 4 * n_hidden
    seg = len(n_kernels) * n_filter
    k_max = max(n_kernels)
    K = k_max * n_emb
    n_branches = 3
    n_conv_cols = n_branches * seg
    N_pad = ((n_conv_cols + 127) // 128) * 128
    L_seg = max(max_len["pre"], max_len["alt"], max_len["cur"])

    emb = dense((n_dict, n_emb))
    emb = emb.at[0].set(0.0)            # padding_idx = 0

    # packed conv weights: taps zero-padded to k_max, widths concatenated,
    # the three branches concatenated along N, N zero-padded to 128 lanes.
    branch_w, branch_b = [], []
    for _ in range(n_branches):         # pre, alt, cur
        ws, bs = [], []
        for k in n_kernels:
            w = dense((k, n_emb, n_filter))          # torch (F, E, k) transposed
            b = dense((1, n_filter))
            w = jnp.pad(w, ((0, k_max - k), (0, 0), (0, 0)))
            ws.append(w.reshape(K, n_filter))
            bs.append(b)
        branch_w.append(jnp.concatenate(ws, axis=-1))   # (K, seg)
        branch_b.append(jnp.concatenate(bs, axis=-1))   # (1, seg)
    w_conv = jnp.pad(jnp.concatenate(branch_w, axis=-1),
                     ((0, 0), (0, N_pad - n_conv_cols)))
    b_conv = jnp.pad(jnp.concatenate(branch_b, axis=-1),
                     ((0, 0), (0, N_pad - n_conv_cols)))

    # combined valid-conv mask: branch i occupies columns [i*seg, (i+1)*seg)
    mask = jnp.zeros((n_branches, L_seg, N_pad), jnp.float32)
    for i, name in enumerate(("pre", "alt", "cur")):
        Lb = max_len[name]
        cols = []
        for k in n_kernels:
            valid = (jnp.arange(L_seg) <= (Lb - k)).astype(jnp.float32)[:, None]
            cols.append(jnp.broadcast_to(valid, (L_seg, n_filter)))
        mask = mask.at[i, :, i * seg:(i + 1) * seg].set(
            jnp.concatenate(cols, axis=-1))

    return {
        "emb": emb,
        "pos_enc": sinusoid_pe(max_len["full"], n_emb),
        "w_conv": w_conv, "b_conv": b_conv, "mask": mask,
        # y_state stand-in (see TODO at top of file)
        "w_state": dense((n_emb, gru_hidden)), "b_state": dense((1, gru_hidden)),
        # g_fc layer 1 split by input block: [seg1 | seg2 | y_state]
        "w1_ab": jnp.stack([dense((seg, crn_hidden)),
                            dense((seg, crn_hidden))], axis=0),
        "w1_s": dense((gru_hidden, crn_hidden)),
        "g_b1": dense((1, crn_hidden)),
        # g_fc layer 2 and f_fc stacked (same shape)
        "gf_w": jnp.stack([dense((crn_hidden, crn_hidden)),
                           dense((crn_hidden, crn_hidden))], axis=0),
        "gf_b": jnp.stack([dense((1, crn_hidden)),
                           dense((1, crn_hidden))], axis=0),
        # out_fc (unpadded; wrapper lane-pads the last layer to 128)
        "o_w1": dense((crn_hidden, gru_hidden)), "o_b1": dense((1, gru_hidden)),
        "o_w2": dense((gru_hidden, n_class)), "o_b2": dense((1, n_class)),
    }


# --------------------------------------------------------------------------
# Full MCKN forward: XLA does the embedding gathers / mean pool, everything
# else runs in one batch-tiled Pallas kernel.
# --------------------------------------------------------------------------
@jax.jit
def mckn_forward(params, x, x_pre, x_alt, x_cur, seq_lens):
    emb = params["emb"]
    E = emb.shape[1]
    w_conv = params["w_conv"]
    K, N_pad = w_conv.shape
    k_max = K // E
    mask = params["mask"]
    L_seg = mask.shape[1]
    Lp = L_seg + k_max - 1
    n_class = params["o_w2"].shape[1]
    gh = params["w_state"].shape[1]
    crn = params["gf_w"].shape[1]
    B = x.shape[0]

    # full-sentence path: embedding + sinusoid PE + masked mean pool
    # (the reference's sort / de-sort by seq_lens is a no-op for this
    #  permutation-invariant y_state stand-in and is dropped)
    x_word = emb[x] + params["pos_enc"][: x.shape[1]][None, :, :]
    Lf = x_word.shape[1]
    valid = (jnp.arange(Lf)[None, :] < seq_lens[:, None]).astype(jnp.float32)
    denom = jnp.maximum(seq_lens.astype(jnp.float32)[:, None], 1.0)
    pooled = (x_word * valid[:, :, None]).sum(axis=1) / denom        # (B, E)

    # segment embeddings, branch-major, zero-padded to L_seg + k_max - 1,
    # shipped as bf16 (matmul accumulates in f32 inside the kernel)
    def seg_emb(tokens):
        e = emb[tokens]                                              # (B, Lb, E)
        return jnp.pad(e, ((0, 0), (0, Lp - e.shape[1]), (0, 0)))
    x_seg = jnp.stack([seg_emb(x_pre), seg_emb(x_alt), seg_emb(x_cur)],
                      axis=0).astype(jnp.bfloat16)                   # (3, B, Lp, E)

    # lane-dense final layer: pad out_fc's last layer to a 128-lane output
    o_pad = ((n_class + 127) // 128) * 128
    o_w2p = jnp.pad(params["o_w2"], ((0, 0), (0, o_pad - n_class)))
    o_b2p = jnp.pad(params["o_b2"], ((0, 0), (0, o_pad - n_class)))

    args = (x_seg, pooled,
            w_conv.astype(jnp.bfloat16), params["b_conv"], mask,
            params["w_state"], params["b_state"],
            params["w1_ab"], params["w1_s"], params["g_b1"],
            params["gf_w"], params["gf_b"],
            params["o_w1"], params["o_b1"], o_w2p, o_b2p)

    # batch-tiled 1-D grid (whole batch at small B, 8-row tiles otherwise)
    TB = B if B <= 8 else 8
    assert B % TB == 0, "batch must be a multiple of the batch tile"
    grid = (B // TB,)

    def const_spec(a):
        nd = a.ndim
        return pl.BlockSpec(a.shape, lambda i, _n=nd: (0,) * _n)

    in_specs = [
        pl.BlockSpec((3, TB, Lp, E), lambda i: (0, i, 0, 0)),        # x_seg
        pl.BlockSpec((TB, E), lambda i: (i, 0)),                     # pooled
    ] + [const_spec(a) for a in args[2:]]
    out_spec = pl.BlockSpec((TB, o_pad), lambda i: (i, 0))

    # advisory cost estimate for XLA scheduling around the kernel
    flops = 2 * (3 * B * L_seg) * K * N_pad
    flops += 2 * B * E * gh
    flops += 2 * (4 * B) * (2 * params["w1_ab"].shape[1]) * crn + 2 * B * gh * crn
    flops += 2 * (4 * B) * crn * crn + 2 * B * crn * crn
    flops += 2 * B * crn * gh + 2 * B * gh * o_pad
    bytes_accessed = sum(a.size * a.dtype.itemsize for a in args) + B * o_pad * 4

    out = pl.pallas_call(
        _mckn_fused_kernel,
        out_shape=jax.ShapeDtypeStruct((B, o_pad), jnp.float32),
        grid=grid,
        in_specs=in_specs,
        out_specs=out_spec,
        compiler_params=pltpu.CompilerParams(
            dimension_semantics=("parallel",),
            vmem_limit_bytes=32 * 1024 * 1024),
        cost_estimate=pl.CostEstimate(flops=int(flops),
                                      transcendentals=int(B * gh),
                                      bytes_accessed=int(bytes_accessed)),
    )(*args)
    return out[:, :n_class]


# --------------------------------------------------------------------------
# Demo
# --------------------------------------------------------------------------
if __name__ == "__main__":
    B = 2
    n_dict, n_emb = 50, 32
    max_len = {"full": 16, "pre": 8, "alt": 8, "cur": 8}
    n_filter = 8
    n_kernels = (2, 3, 4)
    n_hidden = 16
    n_class = 4

    key = jax.random.PRNGKey(0)
    kp, kx, kpre, kalt, kcur, klen = jax.random.split(key, 6)

    params = init_params(kp, n_dict=n_dict, n_emb=n_emb, n_filter=n_filter,
                         n_kernels=n_kernels, n_hidden=n_hidden,
                         n_class=n_class, max_len=max_len)

    seq_lens = jax.random.randint(klen, (B,), 4, max_len["full"] + 1,
                                  dtype=jnp.int32)

    def make_tokens(k, L, lens=None):
        toks = jax.random.randint(k, (B, L), 1, n_dict, dtype=jnp.int32)
        if lens is not None:  # zero (pad) everything past the sequence length
            toks = jnp.where(jnp.arange(L)[None, :] < lens[:, None], toks, 0)
        return toks

    x = make_tokens(kx, max_len["full"], seq_lens)
    x_pre = make_tokens(kpre, max_len["pre"])
    x_alt = make_tokens(kalt, max_len["alt"])
    x_cur = make_tokens(kcur, max_len["cur"])

    out = mckn_forward(params, x, x_pre, x_alt, x_cur, seq_lens)
    out = jax.block_until_ready(out)
    assert out.shape == (B, n_class), out.shape
    assert bool(jnp.all(jnp.isfinite(out)))
    print("KERNEL_OK")
</pallas_src>

<mosaic_0001>
module attributes {stable_mosaic.version = 11 : i64} {
  func.func @_mckn_fused_kernel(%arg0: i32, %arg1: memref<3x2x11x32xbf16, #tpu.memory_space<vmem>>, %arg2: memref<2x32xf32, #tpu.memory_space<vmem>>, %arg3: memref<128x128xbf16, #tpu.memory_space<vmem>>, %arg4: memref<1x128xf32, #tpu.memory_space<vmem>>, %arg5: memref<3x8x128xf32, #tpu.memory_space<vmem>>, %arg6: memref<32x32xf32, #tpu.memory_space<vmem>>, %arg7: memref<1x32xf32, #tpu.memory_space<vmem>>, %arg8: memref<2x24x64xf32, #tpu.memory_space<vmem>>, %arg9: memref<32x64xf32, #tpu.memory_space<vmem>>, %arg10: memref<1x64xf32, #tpu.memory_space<vmem>>, %arg11: memref<2x64x64xf32, #tpu.memory_space<vmem>>, %arg12: memref<2x1x64xf32, #tpu.memory_space<vmem>>, %arg13: memref<64x32xf32, #tpu.memory_space<vmem>>, %arg14: memref<1x32xf32, #tpu.memory_space<vmem>>, %arg15: memref<32x128xf32, #tpu.memory_space<vmem>>, %arg16: memref<1x128xf32, #tpu.memory_space<vmem>>, %arg17: memref<2x128xf32, #tpu.memory_space<vmem>>) attributes {dimension_semantics = [#tpu.dimension_semantics<parallel>], iteration_bounds = array<i64: 1>, scalar_prefetch = 0 : i64, scratch_operands = 0 : i64, tpu.core_type = #tpu.core_type<tc>, window_params = [{transform_indices = @transform_0, window_bounds = array<i64: 3, 2, 11, 32>}, {transform_indices = @transform_1, window_bounds = array<i64: 2, 32>}, {pipeline_mode = #tpu.pipeline_mode<synchronous>, transform_indices = @transform_2, window_bounds = array<i64: 128, 128>}, {pipeline_mode = #tpu.pipeline_mode<synchronous>, transform_indices = @transform_3, window_bounds = array<i64: 1, 128>}, {pipeline_mode = #tpu.pipeline_mode<synchronous>, transform_indices = @transform_4, window_bounds = array<i64: 3, 8, 128>}, {pipeline_mode = #tpu.pipeline_mode<synchronous>, transform_indices = @transform_5, window_bounds = array<i64: 32, 32>}, {pipeline_mode = #tpu.pipeline_mode<synchronous>, transform_indices = @transform_6, window_bounds = array<i64: 1, 32>}, {pipeline_mode = #tpu.pipeline_mode<synchronous>, transform_indices = @transform_7, window_bounds = array<i64: 2, 24, 64>}, {pipeline_mode = #tpu.pipeline_mode<synchronous>, transform_indices = @transform_8, window_bounds = array<i64: 32, 64>}, {pipeline_mode = #tpu.pipeline_mode<synchronous>, transform_indices = @transform_9, window_bounds = array<i64: 1, 64>}, {pipeline_mode = #tpu.pipeline_mode<synchronous>, transform_indices = @transform_10, window_bounds = array<i64: 2, 64, 64>}, {pipeline_mode = #tpu.pipeline_mode<synchronous>, transform_indices = @transform_11, window_bounds = array<i64: 2, 1, 64>}, {pipeline_mode = #tpu.pipeline_mode<synchronous>, transform_indices = @transform_12, window_bounds = array<i64: 64, 32>}, {pipeline_mode = #tpu.pipeline_mode<synchronous>, transform_indices = @transform_13, window_bounds = array<i64: 1, 32>}, {pipeline_mode = #tpu.pipeline_mode<synchronous>, transform_indices = @transform_14, window_bounds = array<i64: 32, 128>}, {pipeline_mode = #tpu.pipeline_mode<synchronous>, transform_indices = @transform_15, window_bounds = array<i64: 1, 128>}, {transform_indices = @transform_16, window_bounds = array<i64: 2, 128>}]} {
    %c0 = arith.constant 0 : index
    %c0_0 = arith.constant 0 : index
    %c0_1 = arith.constant 0 : index
    %c0_2 = arith.constant 0 : index
    %0 = vector.load %arg1[%c0, %c0_0, %c0_1, %c0_2] : memref<3x2x11x32xbf16, #tpu.memory_space<vmem>>, vector<3x2x11x32xbf16>
    %1 = vector.extract_strided_slice %0 {offsets = [0, 0, 0, 0], sizes = [3, 2, 8, 32], strides = [1, 1, 1, 1]} : vector<3x2x11x32xbf16> to vector<3x2x8x32xbf16>
    %2 = vector.shape_cast %1 : vector<3x2x8x32xbf16> to vector<48x32xbf16>
    %3 = vector.extract_strided_slice %0 {offsets = [0, 0, 1, 0], sizes = [3, 2, 8, 32], strides = [1, 1, 1, 1]} : vector<3x2x11x32xbf16> to vector<3x2x8x32xbf16>
    %4 = vector.shape_cast %3 : vector<3x2x8x32xbf16> to vector<48x32xbf16>
    %5 = vector.extract_strided_slice %0 {offsets = [0, 0, 2, 0], sizes = [3, 2, 8, 32], strides = [1, 1, 1, 1]} : vector<3x2x11x32xbf16> to vector<3x2x8x32xbf16>
    %6 = vector.shape_cast %5 : vector<3x2x8x32xbf16> to vector<48x32xbf16>
    %7 = vector.extract_strided_slice %0 {offsets = [0, 0, 3, 0], sizes = [3, 2, 8, 32], strides = [1, 1, 1, 1]} : vector<3x2x11x32xbf16> to vector<3x2x8x32xbf16>
    %8 = vector.shape_cast %7 : vector<3x2x8x32xbf16> to vector<48x32xbf16>
    %9 = tpu.concatenate %2, %4, %6, %8 in 1 : vector<48x32xbf16>, vector<48x32xbf16>, vector<48x32xbf16>, vector<48x32xbf16> -> vector<48x128xbf16>
    %c0_3 = arith.constant 0 : index
    %c0_4 = arith.constant 0 : index
    %10 = vector.load %arg3[%c0_3, %c0_4] : memref<128x128xbf16, #tpu.memory_space<vmem>>, vector<128x128xbf16>
    %cst = arith.constant dense<0.000000e+00> : vector<48x128xf32>
    %11 = tpu.matmul %9, %10, %cst {dimension_numbers = #tpu.dot_dimension_numbers<[1], [0], [0], [1], [0, 0, 1, 1], [], []>} : vector<48x128xbf16>, vector<128x128xbf16>, vector<48x128xf32> -> vector<48x128xf32>
    %c0_5 = arith.constant 0 : index
    %c0_6 = arith.constant 0 : index
    %12 = vector.load %arg4[%c0_5, %c0_6] : memref<1x128xf32, #tpu.memory_space<vmem>>, vector<1x128xf32>
    %13 = vector.broadcast %12 : vector<1x128xf32> to vector<48x128xf32>
    %14 = arith.addf %11, %13 : vector<48x128xf32>
    %cst_7 = arith.constant 0.000000e+00 : f32
    %15 = vector.broadcast %cst_7 : f32 to vector<48x128xf32>
    %16 = arith.maximumf %14, %15 : vector<48x128xf32>
    %17 = vector.shape_cast %16 : vector<48x128xf32> to vector<3x2x8x128xf32>
    %c0_8 = arith.constant 0 : index
    %c0_9 = arith.constant 0 : index
    %c0_10 = arith.constant 0 : index
    %18 = vector.load %arg5[%c0_8, %c0_9, %c0_10] : memref<3x8x128xf32, #tpu.memory_space<vmem>>, vector<3x8x128xf32>
    %19 = vector.shape_cast %18 : vector<3x8x128xf32> to vector<3x1x8x128xf32>
    %20 = vector.broadcast %19 : vector<3x1x8x128xf32> to vector<3x2x8x128xf32>
    %21 = arith.mulf %17, %20 : vector<3x2x8x128xf32>
    %cst_11 = arith.constant dense<0xFF800000> : vector<3x2x128xf32>
    %22 = vector.multi_reduction <maximumf>, %21, %cst_11 [2] : vector<3x2x8x128xf32> to vector<3x2x128xf32>
    %23 = vector.extract_strided_slice %22 {offsets = [0, 0, 0], sizes = [1, 2, 24], strides = [1, 1, 1]} : vector<3x2x128xf32> to vector<1x2x24xf32>
    %24 = vector.shape_cast %23 : vector<1x2x24xf32> to vector<2x24xf32>
    %25 = vector.extract_strided_slice %22 {offsets = [1, 0, 24], sizes = [1, 2, 24], strides = [1, 1, 1]} : vector<3x2x128xf32> to vector<1x2x24xf32>
    %26 = vector.shape_cast %25 : vector<1x2x24xf32> to vector<2x24xf32>
    %27 = vector.extract_strided_slice %22 {offsets = [2, 0, 48], sizes = [1, 2, 24], strides = [1, 1, 1]} : vector<3x2x128xf32> to vector<1x2x24xf32>
    %28 = vector.shape_cast %27 : vector<1x2x24xf32> to vector<2x24xf32>
    %c0_12 = arith.constant 0 : index
    %c0_13 = arith.constant 0 : index
    %29 = vector.load %arg2[%c0_12, %c0_13] : memref<2x32xf32, #tpu.memory_space<vmem>>, vector<2x32xf32>
    %c0_14 = arith.constant 0 : index
    %c0_15 = arith.constant 0 : index
    %30 = vector.load %arg6[%c0_14, %c0_15] : memref<32x32xf32, #tpu.memory_space<vmem>>, vector<32x32xf32>
    %cst_16 = arith.constant dense<0.000000e+00> : vector<2x32xf32>
    %31 = tpu.matmul %29, %30, %cst_16 {dimension_numbers = #tpu.dot_dimension_numbers<[1], [0], [0], [1], [0, 0, 1, 1], [], []>} : vector<2x32xf32>, vector<32x32xf32>, vector<2x32xf32> -> vector<2x32xf32>
    %c0_17 = arith.constant 0 : index
    %c0_18 = arith.constant 0 : index
    %32 = vector.load %arg7[%c0_17, %c0_18] : memref<1x32xf32, #tpu.memory_space<vmem>>, vector<1x32xf32>
    %33 = vector.broadcast %32 : vector<1x32xf32> to vector<2x32xf32>
    %34 = arith.addf %31, %33 : vector<2x32xf32>
    %35 = math.tanh %34 : vector<2x32xf32>
    %36 = tpu.concatenate %24, %28, %24, %26 in 0 : vector<2x24xf32>, vector<2x24xf32>, vector<2x24xf32>, vector<2x24xf32> -> vector<8x24xf32>
    %37 = tpu.concatenate %28, %24, %26, %28 in 0 : vector<2x24xf32>, vector<2x24xf32>, vector<2x24xf32>, vector<2x24xf32> -> vector<8x24xf32>
    %c0_19 = arith.constant 0 : index
    %c0_20 = arith.constant 0 : index
    %38 = vector.load %arg9[%c0_19, %c0_20] : memref<32x64xf32, #tpu.memory_space<vmem>>, vector<32x64xf32>
    %cst_21 = arith.constant dense<0.000000e+00> : vector<2x64xf32>
    %39 = tpu.matmul %35, %38, %cst_21 {dimension_numbers = #tpu.dot_dimension_numbers<[1], [0], [0], [1], [0, 0, 1, 1], [], []>} : vector<2x32xf32>, vector<32x64xf32>, vector<2x64xf32> -> vector<2x64xf32>
    %40 = tpu.concatenate %39, %39, %39, %39 in 0 : vector<2x64xf32>, vector<2x64xf32>, vector<2x64xf32>, vector<2x64xf32> -> vector<8x64xf32>
    %c0_22 = arith.constant 0 : index
    %c0_23 = arith.constant 0 : index
    %c0_24 = arith.constant 0 : index
    %41 = vector.load %arg8[%c0_22, %c0_23, %c0_24] : memref<2x24x64xf32, #tpu.memory_space<vmem>>, vector<1x24x64xf32>
    %42 = vector.shape_cast %41 : vector<1x24x64xf32> to vector<24x64xf32>
    %cst_25 = arith.constant dense<0.000000e+00> : vector<8x64xf32>
    %43 = tpu.matmul %36, %42, %cst_25 {dimension_numbers = #tpu.dot_dimension_numbers<[1], [0], [0], [1], [0, 0, 1, 1], [], []>} : vector<8x24xf32>, vector<24x64xf32>, vector<8x64xf32> -> vector<8x64xf32>
    %c1 = arith.constant 1 : index
    %c0_26 = arith.constant 0 : index
    %c0_27 = arith.constant 0 : index
    %44 = vector.load %arg8[%c1, %c0_26, %c0_27] : memref<2x24x64xf32, #tpu.memory_space<vmem>>, vector<1x24x64xf32>
    %45 = vector.shape_cast %44 : vector<1x24x64xf32> to vector<24x64xf32>
    %cst_28 = arith.constant dense<0.000000e+00> : vector<8x64xf32>
    %46 = tpu.matmul %37, %45, %cst_28 {dimension_numbers = #tpu.dot_dimension_numbers<[1], [0], [0], [1], [0, 0, 1, 1], [], []>} : vector<8x24xf32>, vector<24x64xf32>, vector<8x64xf32> -> vector<8x64xf32>
    %47 = arith.addf %43, %46 : vector<8x64xf32>
    %48 = arith.addf %47, %40 : vector<8x64xf32>
    %c0_29 = arith.constant 0 : index
    %c0_30 = arith.constant 0 : index
    %49 = vector.load %arg10[%c0_29, %c0_30] : memref<1x64xf32, #tpu.memory_space<vmem>>, vector<1x64xf32>
    %50 = vector.broadcast %49 : vector<1x64xf32> to vector<8x64xf32>
    %51 = arith.addf %48, %50 : vector<8x64xf32>
    %cst_31 = arith.constant 0.000000e+00 : f32
    %52 = vector.broadcast %cst_31 : f32 to vector<8x64xf32>
    %53 = arith.maximumf %51, %52 : vector<8x64xf32>
    %c0_32 = arith.constant 0 : index
    %c0_33 = arith.constant 0 : index
    %c0_34 = arith.constant 0 : index
    %54 = vector.load %arg11[%c0_32, %c0_33, %c0_34] : memref<2x64x64xf32, #tpu.memory_space<vmem>>, vector<1x64x64xf32>
    %55 = vector.shape_cast %54 : vector<1x64x64xf32> to vector<64x64xf32>
    %cst_35 = arith.constant dense<0.000000e+00> : vector<8x64xf32>
    %56 = tpu.matmul %53, %55, %cst_35 {dimension_numbers = #tpu.dot_dimension_numbers<[1], [0], [0], [1], [0, 0, 1, 1], [], []>} : vector<8x64xf32>, vector<64x64xf32>, vector<8x64xf32> -> vector<8x64xf32>
    %c0_36 = arith.constant 0 : index
    %c0_37 = arith.constant 0 : index
    %c0_38 = arith.constant 0 : index
    %57 = vector.load %arg12[%c0_36, %c0_37, %c0_38] : memref<2x1x64xf32, #tpu.memory_space<vmem>>, vector<1x1x64xf32>
    %58 = vector.shape_cast %57 : vector<1x1x64xf32> to vector<1x64xf32>
    %59 = vector.broadcast %58 : vector<1x64xf32> to vector<8x64xf32>
    %60 = arith.addf %56, %59 : vector<8x64xf32>
    %cst_39 = arith.constant 0.000000e+00 : f32
    %61 = vector.broadcast %cst_39 : f32 to vector<8x64xf32>
    %62 = arith.maximumf %60, %61 : vector<8x64xf32>
    %63 = vector.shape_cast %62 : vector<8x64xf32> to vector<4x2x64xf32>
    %cst_40 = arith.constant dense<0.000000e+00> : vector<2x64xf32>
    %64 = vector.multi_reduction <add>, %63, %cst_40 [0] : vector<4x2x64xf32> to vector<2x64xf32>
    %c1_41 = arith.constant 1 : index
    %c0_42 = arith.constant 0 : index
    %c0_43 = arith.constant 0 : index
    %65 = vector.load %arg11[%c1_41, %c0_42, %c0_43] : memref<2x64x64xf32, #tpu.memory_space<vmem>>, vector<1x64x64xf32>
    %66 = vector.shape_cast %65 : vector<1x64x64xf32> to vector<64x64xf32>
    %cst_44 = arith.constant dense<0.000000e+00> : vector<2x64xf32>
    %67 = tpu.matmul %64, %66, %cst_44 {dimension_numbers = #tpu.dot_dimension_numbers<[1], [0], [0], [1], [0, 0, 1, 1], [], []>} : vector<2x64xf32>, vector<64x64xf32>, vector<2x64xf32> -> vector<2x64xf32>
    %c1_45 = arith.constant 1 : index
    %c0_46 = arith.constant 0 : index
    %c0_47 = arith.constant 0 : index
    %68 = vector.load %arg12[%c1_45, %c0_46, %c0_47] : memref<2x1x64xf32, #tpu.memory_space<vmem>>, vector<1x1x64xf32>
    %69 = vector.shape_cast %68 : vector<1x1x64xf32> to vector<1x64xf32>
    %70 = vector.broadcast %69 : vector<1x64xf32> to vector<2x64xf32>
    %71 = arith.addf %67, %70 : vector<2x64xf32>
    %cst_48 = arith.constant 0.000000e+00 : f32
    %72 = vector.broadcast %cst_48 : f32 to vector<2x64xf32>
    %73 = arith.maximumf %71, %72 : vector<2x64xf32>
    %c0_49 = arith.constant 0 : index
    %c0_50 = arith.constant 0 : index
    %74 = vector.load %arg13[%c0_49, %c0_50] : memref<64x32xf32, #tpu.memory_space<vmem>>, vector<64x32xf32>
    %cst_51 = arith.constant dense<0.000000e+00> : vector<2x32xf32>
    %75 = tpu.matmul %73, %74, %cst_51 {dimension_numbers = #tpu.dot_dimension_numbers<[1], [0], [0], [1], [0, 0, 1, 1], [], []>} : vector<2x64xf32>, vector<64x32xf32>, vector<2x32xf32> -> vector<2x32xf32>
    %c0_52 = arith.constant 0 : index
    %c0_53 = arith.constant 0 : index
    %76 = vector.load %arg14[%c0_52, %c0_53] : memref<1x32xf32, #tpu.memory_space<vmem>>, vector<1x32xf32>
    %77 = vector.broadcast %76 : vector<1x32xf32> to vector<2x32xf32>
    %78 = arith.addf %75, %77 : vector<2x32xf32>
    %cst_54 = arith.constant 0.000000e+00 : f32
    %79 = vector.broadcast %cst_54 : f32 to vector<2x32xf32>
    %80 = arith.maximumf %78, %79 : vector<2x32xf32>
    %c0_55 = arith.constant 0 : index
    %c0_56 = arith.constant 0 : index
    %81 = vector.load %arg15[%c0_55, %c0_56] : memref<32x128xf32, #tpu.memory_space<vmem>>, vector<32x128xf32>
    %cst_57 = arith.constant dense<0.000000e+00> : vector<2x128xf32>
    %82 = tpu.matmul %80, %81, %cst_57 {dimension_numbers = #tpu.dot_dimension_numbers<[1], [0], [0], [1], [0, 0, 1, 1], [], []>} : vector<2x32xf32>, vector<32x128xf32>, vector<2x128xf32> -> vector<2x128xf32>
    %c0_58 = arith.constant 0 : index
    %c0_59 = arith.constant 0 : index
    %83 = vector.load %arg16[%c0_58, %c0_59] : memref<1x128xf32, #tpu.memory_space<vmem>>, vector<1x128xf32>
    %84 = vector.broadcast %83 : vector<1x128xf32> to vector<2x128xf32>
    %85 = arith.addf %82, %84 : vector<2x128xf32>
    %c0_60 = arith.constant 0 : index
    %c0_61 = arith.constant 0 : index
    %86 = vector.load %arg17[%c0_60, %c0_61] : memref<2x128xf32, #tpu.memory_space<vmem>>, vector<2x128xf32>
    tpu.vector_store %arg17[%c0_60, %c0_61], %85 {strides = array<i32>} : memref<2x128xf32, #tpu.memory_space<vmem>>, vector<2x128xf32>,
    return
  }
  func.func @transform_0(%arg0: i32) -> (i32, i32, i32, i32) {
    %c0_i32 = arith.constant 0 : i32
    %c0_i32_0 = arith.constant 0 : i32
    %c0_i32_1 = arith.constant 0 : i32
    %c0_i32_2 = arith.constant 0 : i32
    return %c0_i32, %arg0, %c0_i32_0, %c0_i32_1 : i32, i32, i32, i32
  }
  func.func @transform_1(%arg0: i32) -> (i32, i32) {
    %c0_i32 = arith.constant 0 : i32
    %c0_i32_0 = arith.constant 0 : i32
    return %arg0, %c0_i32 : i32, i32
  }
  func.func @transform_2(%arg0: i32) -> (i32, i32) {
    %c0_i32 = arith.constant 0 : i32
    %c0_i32_0 = arith.constant 0 : i32
    %c0_i32_1 = arith.constant 0 : i32
    return %c0_i32, %c0_i32_0 : i32, i32
  }
  func.func @transform_3(%arg0: i32) -> (i32, i32) {
    %c0_i32 = arith.constant 0 : i32
    %c0_i32_0 = arith.constant 0 : i32
    %c0_i32_1 = arith.constant 0 : i32
    return %c0_i32, %c0_i32_0 : i32, i32
  }
  func.func @transform_4(%arg0: i32) -> (i32, i32, i32) {
    %c0_i32 = arith.constant 0 : i32
    %c0_i32_0 = arith.constant 0 : i32
    %c0_i32_1 = arith.constant 0 : i32
    %c0_i32_2 = arith.constant 0 : i32
    return %c0_i32, %c0_i32_0, %c0_i32_1 : i32, i32, i32
  }
  func.func @transform_5(%arg0: i32) -> (i32, i32) {
    %c0_i32 = arith.constant 0 : i32
    %c0_i32_0 = arith.constant 0 : i32
    %c0_i32_1 = arith.constant 0 : i32
    return %c0_i32, %c0_i32_0 : i32, i32
  }
  func.func @transform_6(%arg0: i32) -> (i32, i32) {
    %c0_i32 = arith.constant 0 : i32
    %c0_i32_0 = arith.constant 0 : i32
    %c0_i32_1 = arith.constant 0 : i32
    return %c0_i32, %c0_i32_0 : i32, i32
  }
  func.func @transform_7(%arg0: i32) -> (i32, i32, i32) {
    %c0_i32 = arith.constant 0 : i32
    %c0_i32_0 = arith.constant 0 : i32
    %c0_i32_1 = arith.constant 0 : i32
    %c0_i32_2 = arith.constant 0 : i32
    return %c0_i32, %c0_i32_0, %c0_i32_1 : i32, i32, i32
  }
  func.func @transform_8(%arg0: i32) -> (i32, i32) {
    %c0_i32 = arith.constant 0 : i32
    %c0_i32_0 = arith.constant 0 : i32
    %c0_i32_1 = arith.constant 0 : i32
    return %c0_i32, %c0_i32_0 : i32, i32
  }
  func.func @transform_9(%arg0: i32) -> (i32, i32) {
    %c0_i32 = arith.constant 0 : i32
    %c0_i32_0 = arith.constant 0 : i32
    %c0_i32_1 = arith.constant 0 : i32
    return %c0_i32, %c0_i32_0 : i32, i32
  }
  func.func @transform_10(%arg0: i32) -> (i32, i32, i32) {
    %c0_i32 = arith.constant 0 : i32
    %c0_i32_0 = arith.constant 0 : i32
    %c0_i32_1 = arith.constant 0 : i32
    %c0_i32_2 = arith.constant 0 : i32
    return %c0_i32, %c0_i32_0, %c0_i32_1 : i32, i32, i32
  }
  func.func @transform_11(%arg0: i32) -> (i32, i32, i32) {
    %c0_i32 = arith.constant 0 : i32
    %c0_i32_0 = arith.constant 0 : i32
    %c0_i32_1 = arith.constant 0 : i32
    %c0_i32_2 = arith.constant 0 : i32
    return %c0_i32, %c0_i32_0, %c0_i32_1 : i32, i32, i32
  }
  func.func @transform_12(%arg0: i32) -> (i32, i32) {
    %c0_i32 = arith.constant 0 : i32
    %c0_i32_0 = arith.constant 0 : i32
    %c0_i32_1 = arith.constant 0 : i32
    return %c0_i32, %c0_i32_0 : i32, i32
  }
  func.func @transform_13(%arg0: i32) -> (i32, i32) {
    %c0_i32 = arith.constant 0 : i32
    %c0_i32_0 = arith.constant 0 : i32
    %c0_i32_1 = arith.constant 0 : i32
    return %c0_i32, %c0_i32_0 : i32, i32
  }
  func.func @transform_14(%arg0: i32) -> (i32, i32) {
    %c0_i32 = arith.constant 0 : i32
    %c0_i32_0 = arith.constant 0 : i32
    %c0_i32_1 = arith.constant 0 : i32
    return %c0_i32, %c0_i32_0 : i32, i32
  }
  func.func @transform_15(%arg0: i32) -> (i32, i32) {
    %c0_i32 = arith.constant 0 : i32
    %c0_i32_0 = arith.constant 0 : i32
    %c0_i32_1 = arith.constant 0 : i32
    return %c0_i32, %c0_i32_0 : i32, i32
  }
  func.func @transform_16(%arg0: i32) -> (i32, i32) {
    %c0_i32 = arith.constant 0 : i32
    %c0_i32_0 = arith.constant 0 : i32
    return %arg0, %c0_i32 : i32, i32
  }
}

</mosaic_0001>

<llo_original>
// kernel: mckn_forward.1
$region0: #{mckn_forward.1}
  #allocation0 [shape = 'u32[]', space=smem, size = 0x4, offset = 0x4, fixed_abs, tag = 'smem constant byte address 0x4 - core index']
  #allocation1 [shape = 'u32[144,128]{1,0:T(1,128)}', space=vmem, size = 0x12000, scoped, tag = 'internal scratch']
  %s0 = inlined_call_operand.vmem [shape: bf16[3,2,11,32], index: 0, kind: input, shape index: {}]
  %s1 = inlined_call_operand.vmem [shape: f32[2,32], index: 1, kind: input, shape index: {}]
  %s2 = inlined_call_operand.vmem [shape: bf16[128,128], index: 2, kind: input, shape index: {}]
  %s3 = inlined_call_operand.vmem [shape: f32[1,128], index: 3, kind: input, shape index: {}]
  %s4 = inlined_call_operand.vmem [shape: f32[3,8,128], index: 4, kind: input, shape index: {}]
  %s5 = inlined_call_operand.vmem [shape: f32[32,32], index: 5, kind: input, shape index: {}]
  %s6 = inlined_call_operand.vmem [shape: f32[1,32], index: 6, kind: input, shape index: {}]
  %s7 = inlined_call_operand.vmem [shape: f32[2,24,64], index: 7, kind: input, shape index: {}]
  %s8 = inlined_call_operand.vmem [shape: f32[32,64], index: 8, kind: input, shape index: {}]
  %s9 = inlined_call_operand.vmem [shape: f32[1,64], index: 9, kind: input, shape index: {}]
  %s10 = inlined_call_operand.vmem [shape: f32[2,64,64], index: 10, kind: input, shape index: {}]
  %s11 = inlined_call_operand.vmem [shape: f32[2,1,64], index: 11, kind: input, shape index: {}]
  %s12 = inlined_call_operand.vmem [shape: f32[64,32], index: 12, kind: input, shape index: {}]
  %s13 = inlined_call_operand.vmem [shape: f32[1,32], index: 13, kind: input, shape index: {}]
  %s14 = inlined_call_operand.vmem [shape: f32[32,128], index: 14, kind: input, shape index: {}]
  %s15 = inlined_call_operand.vmem [shape: f32[1,128], index: 15, kind: input, shape index: {}]
  %s16 = inlined_call_operand.hbm [shape: f32[2,128], index: 16, kind: output, shape index: {}]
  %s17 = sld [smem:[#allocation0]]
  $region74: #{mckn_forward.1} parent=0
    _
  %s19 = ssub.s32 1, %s17
  %s20 = scalar_select 0, %s19, %s17
  $region1: #{mckn_forward.1} parent=0
    #allocation2 [shape = 'u8[1024]{0}', space=vmem, size = 0x400, scoped, tag = 'output window, operand 0, single buffered']
    #allocation3 [shape = 's32[1]{0}', space=sflag, size = 0x4, scoped, tag = 'scoped memory for mckn_forward.1']
    %21 = vsyncpa [#allocation3], 0
    // Predicated region
    $region2: #{mckn_forward.1} parent=1 // pred_check
      _
    $region3: #{mckn_forward.1} parent=1 // pred_check_branch
      %23 = sbr.rel (0) target = $region5
    $region4: #{mckn_forward.1} parent=1 // pred_region
      _
    $region5: #{mckn_forward.1} parent=1 // pred_fallthru
      _
    // Predicated region
    $region6: #{mckn_forward.1} parent=1 // pred_check
      _
    $region7: #{mckn_forward.1} parent=1 // pred_check_branch
      %25 = sbr.rel (0) target = $region9
    $region8: #{mckn_forward.1} parent=1 // pred_region
      _
    $region9: #{mckn_forward.1} parent=1 // pred_fallthru
      _
    // Predicated region
    $region10: #{mckn_forward.1} parent=1 // pred_check
      _
    $region11: #{mckn_forward.1} parent=1 // pred_check_branch
      %27 = sbr.rel (0) target = $region13
    $region12: #{mckn_forward.1} parent=1 // pred_region
      _
    $region13: #{mckn_forward.1} parent=1 // pred_fallthru
      _
    // Predicated region
    $region14: #{mckn_forward.1} parent=1 // pred_check
      _
    $region15: #{mckn_forward.1} parent=1 // pred_check_branch
      %29 = sbr.rel (0) target = $region17
    $region16: #{mckn_forward.1} parent=1 // pred_region
      _
    $region17: #{mckn_forward.1} parent=1 // pred_fallthru
      _
    // Predicated region
    $region18: #{mckn_forward.1} parent=1 // pred_check
      _
    $region19: #{mckn_forward.1} parent=1 // pred_check_branch
      %31 = sbr.rel (0) target = $region21
    $region20: #{mckn_forward.1} parent=1 // pred_region
      _
    $region21: #{mckn_forward.1} parent=1 // pred_fallthru
      _
    // Predicated region
    $region22: #{mckn_forward.1} parent=1 // pred_check
      _
    $region23: #{mckn_forward.1} parent=1 // pred_check_branch
      %33 = sbr.rel (0) target = $region25
    $region24: #{mckn_forward.1} parent=1 // pred_region
      _
    $region25: #{mckn_forward.1} parent=1 // pred_fallthru
      _
    // Predicated region
    $region26: #{mckn_forward.1} parent=1 // pred_check
      _
    $region27: #{mckn_forward.1} parent=1 // pred_check_branch
      %35 = sbr.rel (0) target = $region29
    $region28: #{mckn_forward.1} parent=1 // pred_region
      _
    $region29: #{mckn_forward.1} parent=1 // pred_fallthru
      _
    // Predicated region
    $region30: #{mckn_forward.1} parent=1 // pred_check
      _
    $region31: #{mckn_forward.1} parent=1 // pred_check_branch
      %37 = sbr.rel (0) target = $region33
    $region32: #{mckn_forward.1} parent=1 // pred_region
      _
    $region33: #{mckn_forward.1} parent=1 // pred_fallthru
      _
    // Predicated region
    $region34: #{mckn_forward.1} parent=1 // pred_check
      _
    $region35: #{mckn_forward.1} parent=1 // pred_check_branch
      %39 = sbr.rel (0) target = $region37
    $region36: #{mckn_forward.1} parent=1 // pred_region
      _
    $region37: #{mckn_forward.1} parent=1 // pred_fallthru
      _
    // Predicated region
    $region38: #{mckn_forward.1} parent=1 // pred_check
      _
    $region39: #{mckn_forward.1} parent=1 // pred_check_branch
      %41 = sbr.rel (0) target = $region41
    $region40: #{mckn_forward.1} parent=1 // pred_region
      _
    $region41: #{mckn_forward.1} parent=1 // pred_fallthru
      _
    // Predicated region
    $region42: #{mckn_forward.1} parent=1 // pred_check
      _
    $region43: #{mckn_forward.1} parent=1 // pred_check_branch
      %43 = sbr.rel (0) target = $region45
    $region44: #{mckn_forward.1} parent=1 // pred_region
      _
    $region45: #{mckn_forward.1} parent=1 // pred_fallthru
      _
    // Predicated region
    $region46: #{mckn_forward.1} parent=1 // pred_check
      _
    $region47: #{mckn_forward.1} parent=1 // pred_check_branch
      %45 = sbr.rel (0) target = $region49
    $region48: #{mckn_forward.1} parent=1 // pred_region
      _
    $region49: #{mckn_forward.1} parent=1 // pred_fallthru
      _
    // Predicated region
    $region50: #{mckn_forward.1} parent=1 // pred_check
      _
    $region51: #{mckn_forward.1} parent=1 // pred_check_branch
      %47 = sbr.rel (0) target = $region53
    $region52: #{mckn_forward.1} parent=1 // pred_region
      _
    $region53: #{mckn_forward.1} parent=1 // pred_fallthru
      _
    // Predicated region
    $region54: #{mckn_forward.1} parent=1 // pred_check
      _
    $region55: #{mckn_forward.1} parent=1 // pred_check_branch
      %49 = sbr.rel (0) target = $region57
    $region56: #{mckn_forward.1} parent=1 // pred_region
      _
    $region57: #{mckn_forward.1} parent=1 // pred_fallthru
      _
    // Predicated region
    $region58: #{mckn_forward.1} parent=1 // pred_check
      _
    $region59: #{mckn_forward.1} parent=1 // pred_check_branch
      %51 = sbr.rel (0) target = $region61
    $region60: #{mckn_forward.1} parent=1 // pred_region
      _
    $region61: #{mckn_forward.1} parent=1 // pred_fallthru
      _
    // Predicated region
    $region62: #{mckn_forward.1} parent=1 // pred_check
      _
    $region63: #{mckn_forward.1} parent=1 // pred_check_branch
      %53 = sbr.rel (0) target = $region65
    $region64: #{mckn_forward.1} parent=1 // pred_region
      _
    $region65: #{mckn_forward.1} parent=1 // pred_fallthru
      _
    %v55 = vld [vmem:[%s0] sm:$0xf]
    %v56 = vld [vmem:[%s0 + $0x4] sm:$0x3]
    %v57 = vld [vmem:[%s0 + $0x8] sm:$0xf]
    %v58 = vld [vmem:[%s0 + $0xc] sm:$0x3]
    %v59 = vld [vmem:[%s0 + $0x10] sm:$0xf]
    %v60 = vld [vmem:[%s0 + $0x14] sm:$0x3]
    %v61 = vld [vmem:[%s0 + $0x18] sm:$0xf]
    %v62 = vld [vmem:[%s0 + $0x1c] sm:$0x3]
    %v63 = vld [vmem:[%s0 + $0x20] sm:$0xf]
    %v64 = vld [vmem:[%s0 + $0x24] sm:$0x3]
    %v65 = vld [vmem:[%s0 + $0x28] sm:$0xf]
    %v66 = vld [vmem:[%s0 + $0x2c] sm:$0x3]
    %vm67 = vsmask.f32 3328
    %vm68 = vsmask.f32 7440
    %vm69 = vmor %vm67, %vm68
    %v71 = vshrl.u32 %v55, 16
    %v73 = vrot.slane %v71, 4
    %v74 = vshll.u32 %v55, 16
    %v76 = vrot.slane %v74, 5
    %v77 = vor.u32 %v73, %v76
    %v78 = vrot.slane %v77, 4
    %v80 = vshll.u32 %v56, 16
    %v82 = vrot.slane %v80, 5
    %v83 = vsel %vm69, %v78, %v82
    %v85 = vshrl.u32 %v57, 16
    %v87 = vrot.slane %v85, 4
    %v88 = vshll.u32 %v57, 16
    %v90 = vrot.slane %v88, 5
    %v91 = vor.u32 %v87, %v90
    %v92 = vrot.slane %v91, 4
    %v94 = vshll.u32 %v58, 16
    %v96 = vrot.slane %v94, 5
    %v97 = vsel %vm69, %v92, %v96
    %v99 = vshrl.u32 %v59, 16
    %v101 = vrot.slane %v99, 4
    %v102 = vshll.u32 %v59, 16
    %v104 = vrot.slane %v102, 5
    %v105 = vor.u32 %v101, %v104
    %v106 = vrot.slane %v105, 4
    %v108 = vshll.u32 %v60, 16
    %v110 = vrot.slane %v108, 5
    %v111 = vsel %vm69, %v106, %v110
    %v113 = vshrl.u32 %v61, 16
    %v115 = vrot.slane %v113, 4
    %v116 = vshll.u32 %v61, 16
    %v118 = vrot.slane %v116, 5
    %v119 = vor.u32 %v115, %v118
    %v120 = vrot.slane %v119, 4
    %v122 = vshll.u32 %v62, 16
    %v124 = vrot.slane %v122, 5
    %v125 = vsel %vm69, %v120, %v124
    %v127 = vshrl.u32 %v63, 16
    %v129 = vrot.slane %v127, 4
    %v130 = vshll.u32 %v63, 16
    %v132 = vrot.slane %v130, 5
    %v133 = vor.u32 %v129, %v132
    %v134 = vrot.slane %v133, 4
    %v136 = vshll.u32 %v64, 16
    %v138 = vrot.slane %v136, 5
    %v139 = vsel %vm69, %v134, %v138
    %v141 = vshrl.u32 %v65, 16
    %v143 = vrot.slane %v141, 4
    %v144 = vshll.u32 %v65, 16
    %v146 = vrot.slane %v144, 5
    %v147 = vor.u32 %v143, %v146
    %v148 = vrot.slane %v147, 4
    %v150 = vshll.u32 %v66, 16
    %v152 = vrot.slane %v150, 5
    %v153 = vsel %vm69, %v148, %v152
    %vm166 = vcmask 1042432
    %vm167 = vcmask 1046532
    %vm168 = vmor %vm166, %vm167
    %v169 = vrot.slane %v55, 5
    %v170 = vrot.slane %v169, 4
    %v171 = vrot.slane %v56, 5
    %v172 = vsel %vm168, %v170, %v171
    %v173 = vrot.slane %v57, 5
    %v174 = vrot.slane %v173, 4
    %v175 = vrot.slane %v58, 5
    %v176 = vsel %vm168, %v174, %v175
    %v177 = vrot.slane %v59, 5
    %v178 = vrot.slane %v177, 4
    %v179 = vrot.slane %v60, 5
    %v180 = vsel %vm168, %v178, %v179
    %v181 = vrot.slane %v61, 5
    %v182 = vrot.slane %v181, 4
    %v183 = vrot.slane %v62, 5
    %v184 = vsel %vm168, %v182, %v183
    %v185 = vrot.slane %v63, 5
    %v186 = vrot.slane %v185, 4
    %v187 = vrot.slane %v64, 5
    %v188 = vsel %vm168, %v186, %v187
    %v189 = vrot.slane %v65, 5
    %v190 = vrot.slane %v189, 4
    %v191 = vrot.slane %v66, 5
    %v192 = vsel %vm168, %v190, %v191
    %vm193 = vsmask.f32 2304
    %vm194 = vsmask.f32 6416
    %vm195 = vmor %vm193, %vm194
    %v196 = vrot.slane %v71, 5
    %v197 = vrot.slane %v74, 6
    %v198 = vor.u32 %v196, %v197
    %v199 = vrot.slane %v198, 4
    %v200 = vshrl.u32 %v56, 16
    %v202 = vrot.slane %v200, 5
    %v203 = vrot.slane %v80, 6
    %v204 = vor.u32 %v202, %v203
    %v205 = vsel %vm195, %v199, %v204
    %v206 = vrot.slane %v85, 5
    %v207 = vrot.slane %v88, 6
    %v208 = vor.u32 %v206, %v207
    %v209 = vrot.slane %v208, 4
    %v210 = vshrl.u32 %v58, 16
    %v212 = vrot.slane %v210, 5
    %v213 = vrot.slane %v94, 6
    %v214 = vor.u32 %v212, %v213
    %v215 = vsel %vm195, %v209, %v214
    %v216 = vrot.slane %v99, 5
    %v217 = vrot.slane %v102, 6
    %v218 = vor.u32 %v216, %v217
    %v219 = vrot.slane %v218, 4
    %v220 = vshrl.u32 %v60, 16
    %v222 = vrot.slane %v220, 5
    %v223 = vrot.slane %v108, 6
    %v224 = vor.u32 %v222, %v223
    %v225 = vsel %vm195, %v219, %v224
    %v226 = vrot.slane %v113, 5
    %v227 = vrot.slane %v116, 6
    %v228 = vor.u32 %v226, %v227
    %v229 = vrot.slane %v228, 4
    %v230 = vshrl.u32 %v62, 16
    %v232 = vrot.slane %v230, 5
    %v233 = vrot.slane %v122, 6
    %v234 = vor.u32 %v232, %v233
    %v235 = vsel %vm195, %v229, %v234
    %v236 = vrot.slane %v127, 5
    %v237 = vrot.slane %v130, 6
    %v238 = vor.u32 %v236, %v237
    %v239 = vrot.slane %v238, 4
    %v240 = vshrl.u32 %v64, 16
    %v242 = vrot.slane %v240, 5
    %v243 = vrot.slane %v136, 6
    %v244 = vor.u32 %v242, %v243
    %v245 = vsel %vm195, %v239, %v244
    %v246 = vrot.slane %v141, 5
    %v247 = vrot.slane %v144, 6
    %v248 = vor.u32 %v246, %v247
    %v249 = vrot.slane %v248, 4
    %v250 = vshrl.u32 %v66, 16
    %v252 = vrot.slane %v250, 5
    %v253 = vrot.slane %v150, 6
    %v254 = vor.u32 %v252, %v253
    %v255 = vsel %vm195, %v249, %v254
    %v256 = vunpack.c.l.b16 %v55
    %v257 = vunpack.c.l.b16 %v57
    %v258 = vunpack.c.l.b16 %v59
    %v259 = vunpack.c.l.b16 %v61
    %v260 = vunpack.c.l.b16 %v63
    %v261 = vunpack.c.l.b16 %v65
    %v262 = vpack.c.b16 %v257, %v256
    %v263 = vpack.c.b16 %v259, %v258
    %v264 = vpack.c.b16 %v261, %v260
    %v265 = vunpack.c.l.b16 %v83
    %v266 = vunpack.c.l.b16 %v97
    %v267 = vunpack.c.l.b16 %v111
    %v268 = vunpack.c.l.b16 %v125
    %v269 = vunpack.c.l.b16 %v139
    %v270 = vunpack.c.l.b16 %v153
    %v271 = vpack.c.b16 %v266, %v265
    %v272 = vpack.c.b16 %v268, %v267
    %v273 = vpack.c.b16 %v270, %v269
    %274 = vrot.lane.b32.xlu0 %v271, 32
    %v275 = vpop.permute.xlu0 %274
    %276 = vrot.lane.b32.xlu0 %v272, 32
    %v277 = vpop.permute.xlu0 %276
    %278 = vrot.lane.b32.xlu0 %v273, 32
    %v279 = vpop.permute.xlu0 %278
    %v280 = vunpack.c.l.b16 %v172
    %v281 = vunpack.c.l.b16 %v176
    %v282 = vunpack.c.l.b16 %v180
    %v283 = vunpack.c.l.b16 %v184
    %v284 = vunpack.c.l.b16 %v188
    %v285 = vunpack.c.l.b16 %v192
    %v286 = vpack.c.b16 %v281, %v280
    %v287 = vpack.c.b16 %v283, %v282
    %v288 = vpack.c.b16 %v285, %v284
    %289 = vrot.lane.b32.xlu0 %v286, 64
    %v290 = vpop.permute.xlu0 %289
    %291 = vrot.lane.b32.xlu0 %v287, 64
    %v292 = vpop.permute.xlu0 %291
    %293 = vrot.lane.b32.xlu0 %v288, 64
    %v294 = vpop.permute.xlu0 %293
    %v295 = vunpack.c.l.b16 %v205
    %v296 = vunpack.c.l.b16 %v215
    %v297 = vunpack.c.l.b16 %v225
    %v298 = vunpack.c.l.b16 %v235
    %v299 = vunpack.c.l.b16 %v245
    %v300 = vunpack.c.l.b16 %v255
    %v301 = vpack.c.b16 %v296, %v295
    %v302 = vpack.c.b16 %v298, %v297
    %v303 = vpack.c.b16 %v300, %v299
    %304 = vrot.lane.b32.xlu0 %v301, 96
    %v305 = vpop.permute.xlu0 %304
    %306 = vrot.lane.b32.xlu0 %v302, 96
    %v307 = vpop.permute.xlu0 %306
    %308 = vrot.lane.b32.xlu0 %v303, 96
    %v309 = vpop.permute.xlu0 %308
    %vm310 = vcmask 261120
    %v313 = vsel %vm310, %v262, %v275
    %v316 = vsel %vm310, %v263, %v277
    %v319 = vsel %vm310, %v264, %v279
    %vm320 = vcmask 523264
    %v322 = vsel %vm320, %v313, %v290
    %v324 = vsel %vm320, %v316, %v292
    %v326 = vsel %vm320, %v319, %v294
    %vm327 = vcmask 785408
    %v329 = vsel %vm327, %v322, %v305
    %v332 = vsel %vm327, %v324, %v307
    %v335 = vsel %vm327, %v326, %v309
    %v337 = vld [vmem:[%s2] sm:$0xf]
    %v338 = vld [vmem:[%s2 + $0x4] sm:$0xf]
    %v339 = vld [vmem:[%s2 + $0x8] sm:$0xf]
    %v340 = vld [vmem:[%s2 + $0xc] sm:$0xf]
    %v341 = vld [vmem:[%s2 + $0x10] sm:$0xf]
    %v342 = vld [vmem:[%s2 + $0x14] sm:$0xf]
    %v343 = vld [vmem:[%s2 + $0x18] sm:$0xf]
    %v344 = vld [vmem:[%s2 + $0x1c] sm:$0xf]
    %v345 = vld [vmem:[%s2 + $0x20] sm:$0xf]
    %v346 = vld [vmem:[%s2 + $0x24] sm:$0xf]
    %v347 = vld [vmem:[%s2 + $0x28] sm:$0xf]
    %v348 = vld [vmem:[%s2 + $0x2c] sm:$0xf]
    %v349 = vld [vmem:[%s2 + $0x30] sm:$0xf]
    %v350 = vld [vmem:[%s2 + $0x34] sm:$0xf]
    %v351 = vld [vmem:[%s2 + $0x38] sm:$0xf]
    %v352 = vld [vmem:[%s2 + $0x3c] sm:$0xf]
    %v353 = vld [vmem:[%s3] sm:$0x1]
    %v355 = vlaneseq
    %v356 = vshrl.u32 %v355, 7
    %v357 = vsub.s32 0, %v356
    %v358 = vrot.slane %v353, %v357
    %v376 = vunpack.c.l.b16 %v337
    %v377 = vunpack.c.l.b16 %v338
    %v378 = vunpack.c.l.b16 %v339
    %v379 = vunpack.c.l.b16 %v340
    %v380 = vunpack.c.l.b16 %v341
    %v381 = vunpack.c.l.b16 %v342
    %v382 = vunpack.c.l.b16 %v343
    %v383 = vunpack.c.l.b16 %v344
    %v384 = vunpack.c.l.b16 %v345
    %v385 = vunpack.c.l.b16 %v346
    %v386 = vunpack.c.l.b16 %v347
    %v387 = vunpack.c.l.b16 %v348
    %v388 = vunpack.c.l.b16 %v349
    %v389 = vunpack.c.l.b16 %v350
    %v390 = vunpack.c.l.b16 %v351
    %v391 = vunpack.c.l.b16 %v352
    %v392 = vpack.c.b16 %v377, %v376
    %v393 = vpack.c.b16 %v379, %v378
    %v394 = vpack.c.b16 %v381, %v380
    %v395 = vpack.c.b16 %v383, %v382
    %v396 = vpack.c.b16 %v385, %v384
    %v397 = vpack.c.b16 %v387, %v386
    %v398 = vpack.c.b16 %v389, %v388
    %v399 = vpack.c.b16 %v391, %v390
    %408 = vmatprep.subr.bf16.mxu0 0
    %409 = vmatpush1.bf16.msra.mxu0 %v399
    %410 = vmatprep.subr.bf16.mxu0 0
    %411 = vmatpush1.bf16.msra.mxu0 %v398
    %412 = vmatprep.subr.bf16.mxu0 0
    %413 = vmatpush1.bf16.msra.mxu0 %v397
    %414 = vmatprep.subr.bf16.mxu0 0
    %415 = vmatpush1.bf16.msra.mxu0 %v396
    %416 = vmatprep.subr.bf16.mxu0 0
    %417 = vmatpush1.bf16.msra.mxu0 %v395
    %418 = vmatprep.subr.bf16.mxu0 0
    %419 = vmatpush1.bf16.msra.mxu0 %v394
    %420 = vmatprep.subr.bf16.mxu0 0
    %421 = vmatpush1.bf16.msra.mxu0 %v393
    %422 = vmatprep.subr.bf16.mxu0 0
    %423 = vmatpush1.bf16.msra.mxu0 %v392
    %424 = vmatprep.subr.bf16.mxu0 0
    %425 = vmatpush2.bf16.msra.mxu0 0
    %426 = vmatprep.subr.bf16.mxu0 0
    %427 = vmatpush2.bf16.msra.mxu0 0
    %428 = vmatprep.subr.bf16.mxu0 0
    %429 = vmatpush2.bf16.msra.mxu0 0
    %430 = vmatprep.subr.bf16.mxu0 0
    %431 = vmatpush2.bf16.msra.mxu0 0
    %432 = vmatprep.subr.bf16.mxu0 0
    %433 = vmatpush2.bf16.msra.mxu0 0
    %434 = vmatprep.subr.bf16.mxu0 0
    %435 = vmatpush2.bf16.msra.mxu0 0
    %436 = vmatprep.subr.bf16.mxu0 0
    %437 = vmatpush2.bf16.msra.mxu0 0
    %438 = vmatprep.subr.bf16.mxu0 0
    %439 = vmatpush2.bf16.msra.mxu0 0
    %440 = vmatprep.mubr.bf16.mxu0 0
    %441 = vmatmul.mubr.bf16.gmra.mxu0 %v329
    %v442 = vpop.f32.mrf.mxu0
    %v443 = vadd.f32 %v358, %v442
    %v444 = vpop.f32.mrf.mxu0
    %v445 = vpop.f32.mrf.mxu0
    %v446 = vadd.f32 %v358, %v445
    %v447 = vpop.f32.mrf.mxu0
    %448 = vmatprep.mubr.bf16.mxu0 0
    %449 = vmatmul.mubr.bf16.gmra.mxu0 %v332
    %v450 = vpop.f32.mrf.mxu0
    %v451 = vadd.f32 %v358, %v450
    %v452 = vpop.f32.mrf.mxu0
    %v453 = vpop.f32.mrf.mxu0
    %v454 = vadd.f32 %v358, %v453
    %v455 = vpop.f32.mrf.mxu0
    %456 = vmatprep.mubr.bf16.mxu0 0
    %457 = vmatmul.mubr.bf16.gmra.mxu0 %v335
    %v458 = vpop.f32.mrf.mxu0
    %v459 = vadd.f32 %v358, %v458
    %v460 = vpop.f32.mrf.mxu0
    %v461 = vpop.f32.mrf.mxu0
    %v462 = vadd.f32 %v358, %v461
    %v463 = vpop.f32.mrf.mxu0
    %464 = vdwg.mxu0
    %v465 = vmax.f32 %v443, 0.0
    %v466 = vmax.f32 %v446, 0.0
    %v467 = vmax.f32 %v451, 0.0
    %v468 = vmax.f32 %v454, 0.0
    %v469 = vmax.f32 %v459, 0.0
    %v470 = vmax.f32 %v462, 0.0
    %v471 = vld [vmem:[%s4] sm:$0xff]
    %v472 = vld [vmem:[%s4 + $0x8] sm:$0xff]
    %v473 = vld [vmem:[%s4 + $0x10] sm:$0xff]
    %v474 = vmul.f32 %v465, %v471
    %v475 = vmul.f32 %v466, %v471
    %v476 = vmul.f32 %v467, %v472
    %v477 = vmul.f32 %v468, %v472
    %v478 = vmul.f32 %v469, %v473
    %v479 = vmul.f32 %v470, %v473
    %v480 = vrot.slane %v474, 4
    %v481 = vmax.f32 %v474, %v480
    %v482 = vrot.slane %v481, 2
    %v483 = vmax.f32 %v481, %v482
    %v484 = vrot.slane %v483, 1
    %v485 = vmax.f32 %v483, %v484
    %v486 = vrot.slane %v475, 4
    %v487 = vmax.f32 %v475, %v486
    %v488 = vrot.slane %v487, 2
    %v489 = vmax.f32 %v487, %v488
    %v490 = vrot.slane %v489, 1
    %v491 = vmax.f32 %v489, %v490
    %v492 = vrot.slane %v476, 4
    %v493 = vmax.f32 %v476, %v492
    %v494 = vrot.slane %v493, 2
    %v495 = vmax.f32 %v493, %v494
    %v496 = vrot.slane %v495, 1
    %v497 = vmax.f32 %v495, %v496
    %v498 = vrot.slane %v477, 4
    %v499 = vmax.f32 %v477, %v498
    %v500 = vrot.slane %v499, 2
    %v501 = vmax.f32 %v499, %v500
    %v502 = vrot.slane %v501, 1
    %v503 = vmax.f32 %v501, %v502
    %v504 = vrot.slane %v478, 4
    %v505 = vmax.f32 %v478, %v504
    %v506 = vrot.slane %v505, 2
    %v507 = vmax.f32 %v505, %v506
    %v508 = vrot.slane %v507, 1
    %v509 = vmax.f32 %v507, %v508
    %v510 = vrot.slane %v479, 4
    %v511 = vmax.f32 %v479, %v510
    %v512 = vrot.slane %v511, 2
    %v513 = vmax.f32 %v511, %v512
    %v514 = vrot.slane %v513, 1
    %v515 = vmax.f32 %v513, %v514
    %v516 = vld [vmem:[%s1] sm:$0x3]
    %v517 = vld [vmem:[%s5] sm:$0xff]
    %v518 = vld [vmem:[%s5 + $0x8] sm:$0xff]
    %v519 = vld [vmem:[%s5 + $0x10] sm:$0xff]
    %v520 = vld [vmem:[%s5 + $0x18] sm:$0xff]
    %v521 = vld [vmem:[%s6] sm:$0x1]
    %v523 = vlaneseq
    %v524 = vshrl.u32 %v523, 7
    %v525 = vsub.s32 0, %v524
    %v526 = vrot.slane %v521, %v525
    %v529 = vsel %vm310, %v516, 0
    %531 = vmatprep.subr.mxu0 0.0
    %532 = vmatpush1.msra.mxu0 0.0
    %533 = vmatprep.subr.mxu0 0.0
    %534 = vmatpush1.msra.mxu0 0.0
    %535 = vmatprep.subr.mxu0 0.0
    %536 = vmatpush1.msra.mxu0 0.0
    %537 = vmatprep.subr.mxu0 0.0
    %538 = vmatpush1.msra.mxu0 0.0
    %539 = vmatprep.subr.mxu0 0.0
    %540 = vmatpush1.msra.mxu0 0.0
    %541 = vmatprep.subr.mxu0 0.0
    %542 = vmatpush1.msra.mxu0 0.0
    %543 = vmatprep.subr.mxu0 0.0
    %544 = vmatpush1.msra.mxu0 0.0
    %545 = vmatprep.subr.mxu0 0.0
    %546 = vmatpush1.msra.mxu0 0.0
    %547 = vmatprep.subr.mxu0 0.0
    %548 = vmatpush1.msra.mxu0 0.0
    %549 = vmatprep.subr.mxu0 0.0
    %550 = vmatpush1.msra.mxu0 0.0
    %551 = vmatprep.subr.mxu0 0.0
    %552 = vmatpush1.msra.mxu0 0.0
    %553 = vmatprep.subr.mxu0 0.0
    %554 = vmatpush1.msra.mxu0 0.0
    %555 = vmatprep.subr.mxu0 0.0
    %556 = vmatpush1.msra.mxu0 %v520
    %557 = vmatprep.subr.mxu0 0.0
    %558 = vmatpush1.msra.mxu0 %v519
    %559 = vmatprep.subr.mxu0 0.0
    %560 = vmatpush1.msra.mxu0 %v518
    %561 = vmatprep.subr.mxu0 0.0
    %562 = vmatpush1.msra.mxu0 %v517
    %563 = vmatprep.subr.mxu0 0.0
    %564 = vmatpush2.msra.mxu0 0.0
    %565 = vmatprep.subr.mxu0 0.0
    %566 = vmatpush2.msra.mxu0 0.0
    %567 = vmatprep.subr.mxu0 0.0
    %568 = vmatpush2.msra.mxu0 0.0
    %569 = vmatprep.subr.mxu0 0.0
    %570 = vmatpush2.msra.mxu0 0.0
    %571 = vmatprep.subr.mxu0 0.0
    %572 = vmatpush2.msra.mxu0 0.0
    %573 = vmatprep.subr.mxu0 0.0
    %574 = vmatpush2.msra.mxu0 0.0
    %575 = vmatprep.subr.mxu0 0.0
    %576 = vmatpush2.msra.mxu0 0.0
    %577 = vmatprep.subr.mxu0 0.0
    %578 = vmatpush2.msra.mxu0 0.0
    %579 = vmatprep.subr.mxu0 0.0
    %580 = vmatpush2.msra.mxu0 0.0
    %581 = vmatprep.subr.mxu0 0.0
    %582 = vmatpush2.msra.mxu0 0.0
    %583 = vmatprep.subr.mxu0 0.0
    %584 = vmatpush2.msra.mxu0 0.0
    %585 = vmatprep.subr.mxu0 0.0
    %586 = vmatpush2.msra.mxu0 0.0
    %587 = vmatprep.subr.mxu0 0.0
    %588 = vmatpush2.msra.mxu0 0.0
    %589 = vmatprep.subr.mxu0 0.0
    %590 = vmatpush2.msra.mxu0 0.0
    %591 = vmatprep.subr.mxu0 0.0
    %592 = vmatpush2.msra.mxu0 0.0
    %593 = vmatprep.subr.mxu0 0.0
    %594 = vmatpush2.msra.mxu0 0.0
    %595 = vmatprep.mubr.f32.mxu0 0.0
    %596 = vmatmul.mubr.f32.gmra.mxu0 %v529
    %v597 = vpop.f32.mrf.mxu0
    %v598 = vadd.f32 %v526, %v597
    %v599 = vpop.f32.mrf.mxu0
    %600 = vdwg.mxu0
    %v601 = vtanh.pop %v598
    %vm604 = vcmask 1041409
    %v605 = vsel %vm604, %v491, %v485
    %vm609 = vcmask 1043459
    %v610 = vsel %vm609, %v515, %v509
    %611 = vrot.lane.b32.xlu0 %v610, 80
    %v612 = vpop.permute.xlu0 %611
    %vm614 = vcmask 1045509
    %v615 = vsel %vm614, %v491, %v485
    %vm619 = vcmask 1047559
    %v620 = vsel %vm619, %v503, %v497
    %621 = vrot.lane.b32.xlu0 %v620, 104
    %v622 = vpop.permute.xlu0 %621
    %vm624 = vcmask 1041408
    %v625 = vsel %vm624, %v605, %v612
    %vm626 = vcmask 1043456
    %v627 = vsel %vm626, %v625, %v615
    %vm628 = vcmask 1045504
    %v629 = vsel %vm628, %v627, %v622
    %v630 = vsel %vm604, %v515, %v509
    %v632 = vsel %vm609, %v491, %v485
    %633 = vrot.lane.b32.xlu0 %v632, 48
    %v634 = vpop.permute.xlu0 %633
    %v636 = vsel %vm614, %v503, %v497
    %637 = vrot.lane.b32.xlu0 %v636, 24
    %v638 = vpop.permute.xlu0 %637
    %v640 = vsel %vm619, %v515, %v509
    %v642 = vsel %vm624, %v630, %v634
    %v643 = vsel %vm626, %v642, %v638
    %v644 = vsel %vm628, %v643, %v640
    %v645 = vld [vmem:[%s8] sm:$0xff]
    %v646 = vld [vmem:[%s8 + $0x8] sm:$0xff]
    %v647 = vld [vmem:[%s8 + $0x10] sm:$0xff]
    %v648 = vld [vmem:[%s8 + $0x18] sm:$0xff]
    %v650 = vsel %vm310, %v601, 0
    %652 = vmatprep.subr.mxu0 0.0
    %653 = vmatpush1.msra.mxu0 0.0
    %654 = vmatprep.subr.mxu0 0.0
    %655 = vmatpush1.msra.mxu0 0.0
    %656 = vmatprep.subr.mxu0 0.0
    %657 = vmatpush1.msra.mxu0 0.0
    %658 = vmatprep.subr.mxu0 0.0
    %659 = vmatpush1.msra.mxu0 0.0
    %660 = vmatprep.subr.mxu0 0.0
    %661 = vmatpush1.msra.mxu0 0.0
    %662 = vmatprep.subr.mxu0 0.0
    %663 = vmatpush1.msra.mxu0 0.0
    %664 = vmatprep.subr.mxu0 0.0
    %665 = vmatpush1.msra.mxu0 0.0
    %666 = vmatprep.subr.mxu0 0.0
    %667 = vmatpush1.msra.mxu0 0.0
    %668 = vmatprep.subr.mxu0 0.0
    %669 = vmatpush1.msra.mxu0 0.0
    %670 = vmatprep.subr.mxu0 0.0
    %671 = vmatpush1.msra.mxu0 0.0
    %672 = vmatprep.subr.mxu0 0.0
    %673 = vmatpush1.msra.mxu0 0.0
    %674 = vmatprep.subr.mxu0 0.0
    %675 = vmatpush1.msra.mxu0 0.0
    %676 = vmatprep.subr.mxu0 0.0
    %677 = vmatpush1.msra.mxu0 %v648
    %678 = vmatprep.subr.mxu0 0.0
    %679 = vmatpush1.msra.mxu0 %v647
    %680 = vmatprep.subr.mxu0 0.0
    %681 = vmatpush1.msra.mxu0 %v646
    %682 = vmatprep.subr.mxu0 0.0
    %683 = vmatpush1.msra.mxu0 %v645
    %684 = vmatprep.subr.mxu0 0.0
    %685 = vmatpush2.msra.mxu0 0.0
    %686 = vmatprep.subr.mxu0 0.0
    %687 = vmatpush2.msra.mxu0 0.0
    %688 = vmatprep.subr.mxu0 0.0
    %689 = vmatpush2.msra.mxu0 0.0
    %690 = vmatprep.subr.mxu0 0.0
    %691 = vmatpush2.msra.mxu0 0.0
    %692 = vmatprep.subr.mxu0 0.0
    %693 = vmatpush2.msra.mxu0 0.0
    %694 = vmatprep.subr.mxu0 0.0
    %695 = vmatpush2.msra.mxu0 0.0
    %696 = vmatprep.subr.mxu0 0.0
    %697 = vmatpush2.msra.mxu0 0.0
    %698 = vmatprep.subr.mxu0 0.0
    %699 = vmatpush2.msra.mxu0 0.0
    %700 = vmatprep.subr.mxu0 0.0
    %701 = vmatpush2.msra.mxu0 0.0
    %702 = vmatprep.subr.mxu0 0.0
    %703 = vmatpush2.msra.mxu0 0.0
    %704 = vmatprep.subr.mxu0 0.0
    %705 = vmatpush2.msra.mxu0 0.0
    %706 = vmatprep.subr.mxu0 0.0
    %707 = vmatpush2.msra.mxu0 0.0
    %708 = vmatprep.subr.mxu0 0.0
    %709 = vmatpush2.msra.mxu0 0.0
    %710 = vmatprep.subr.mxu0 0.0
    %711 = vmatpush2.msra.mxu0 0.0
    %712 = vmatprep.subr.mxu0 0.0
    %713 = vmatpush2.msra.mxu0 0.0
    %714 = vmatprep.subr.mxu0 0.0
    %715 = vmatpush2.msra.mxu0 0.0
    %716 = vmatprep.mubr.f32.mxu0 0.0
    %717 = vmatmul.mubr.f32.gmra.mxu0 %v650
    %v718 = vpop.f32.mrf.mxu0
    %v719 = vadd.f32 0.0, %v718
    %v720 = vpop.f32.mrf.mxu0
    %721 = vdwg.mxu0
    %v723 = vrot.slane %v719, 6
    %v725 = vrot.slane %v719, 4
    %v727 = vrot.slane %v719, 2
    %v729 = vsel %vm624, %v719, %v723
    %v730 = vsel %vm626, %v729, %v725
    %v731 = vsel %vm628, %v730, %v727
    %v732 = vld [vmem:[%s7] sm:$0xff]
    %v733 = vld [vmem:[%s7 + $0x8] sm:$0xff]
    %v734 = vld [vmem:[%s7 + $0x10] sm:$0xff]
    %s735 = scalar_lea.vmem %s7, 24
    %v736 = vld [vmem:[%s735] sm:$0xff]
    %v737 = vld [vmem:[%s735 + $0x8] sm:$0xff]
    %v738 = vld [vmem:[%s735 + $0x10] sm:$0xff]
    %740 = vrot.lane.b32.xlu0 %v644, 80
    %v741 = vpop.permute.xlu0 %740
    %vm742 = vcmask 195584
    %v743 = vsel %vm742, %v741, 0
    %745 = vmatprep.subr.mxu0 0.0
    %746 = vmatpush1.msra.mxu0 0.0
    %747 = vmatprep.subr.mxu0 0.0
    %748 = vmatpush1.msra.mxu0 0.0
    %749 = vmatprep.subr.mxu0 0.0
    %750 = vmatpush1.msra.mxu0 0.0
    %751 = vmatprep.subr.mxu0 0.0
    %752 = vmatpush1.msra.mxu0 0.0
    %753 = vmatprep.subr.mxu0 0.0
    %754 = vmatpush1.msra.mxu0 0.0
    %755 = vmatprep.subr.mxu0 0.0
    %756 = vmatpush1.msra.mxu0 0.0
    %757 = vmatprep.subr.mxu0 0.0
    %758 = vmatpush1.msra.mxu0 0.0
    %759 = vmatprep.subr.mxu0 0.0
    %760 = vmatpush1.msra.mxu0 0.0
    %761 = vmatprep.subr.mxu0 0.0
    %762 = vmatpush1.msra.mxu0 0.0
    %763 = vmatprep.subr.mxu0 0.0
    %764 = vmatpush1.msra.mxu0 0.0
    %765 = vmatprep.subr.mxu0 0.0
    %766 = vmatpush1.msra.mxu0 0.0
    %767 = vmatprep.subr.mxu0 0.0
    %768 = vmatpush1.msra.mxu0 0.0
    %769 = vmatprep.subr.mxu0 0.0
    %770 = vmatpush1.msra.mxu0 0.0
    %771 = vmatprep.subr.mxu0 0.0
    %772 = vmatpush1.msra.mxu0 %v738
    %773 = vmatprep.subr.mxu0 0.0
    %774 = vmatpush1.msra.mxu0 %v737
    %775 = vmatprep.subr.mxu0 0.0
    %776 = vmatpush1.msra.mxu0 %v736
    %777 = vmatprep.subr.mxu0 0.0
    %778 = vmatpush2.msra.mxu0 0.0
    %779 = vmatprep.subr.mxu0 0.0
    %780 = vmatpush2.msra.mxu0 0.0
    %781 = vmatprep.subr.mxu0 0.0
    %782 = vmatpush2.msra.mxu0 0.0
    %783 = vmatprep.subr.mxu0 0.0
    %784 = vmatpush2.msra.mxu0 0.0
    %785 = vmatprep.subr.mxu0 0.0
    %786 = vmatpush2.msra.mxu0 0.0
    %787 = vmatprep.subr.mxu0 0.0
    %788 = vmatpush2.msra.mxu0 0.0
    %789 = vmatprep.subr.mxu0 0.0
    %790 = vmatpush2.msra.mxu0 0.0
    %791 = vmatprep.subr.mxu0 0.0
    %792 = vmatpush2.msra.mxu0 0.0
    %793 = vmatprep.subr.mxu0 0.0
    %794 = vmatpush2.msra.mxu0 0.0
    %795 = vmatprep.subr.mxu0 0.0
    %796 = vmatpush2.msra.mxu0 0.0
    %797 = vmatprep.subr.mxu0 0.0
    %798 = vmatpush2.msra.mxu0 0.0
    %799 = vmatprep.subr.mxu0 0.0
    %800 = vmatpush2.msra.mxu0 0.0
    %801 = vmatprep.subr.mxu0 0.0
    %802 = vmatpush2.msra.mxu0 0.0
    %803 = vmatprep.subr.mxu0 0.0
    %804 = vmatpush2.msra.mxu0 0.0
    %805 = vmatprep.subr.mxu0 0.0
    %806 = vmatpush2.msra.mxu0 0.0
    %807 = vmatprep.subr.mxu0 0.0
    %808 = vmatpush2.msra.mxu0 0.0
    %809 = vmatprep.mubr.f32.mxu0 0.0
    %810 = vmatmul.mubr.f32.gmra.mxu0 %v743
    %v811 = vpop.f32.mrf.mxu0
    %v812 = vadd.f32 0.0, %v811
    %v813 = vpop.f32.mrf.mxu0
    %814 = vdwg.mxu0
    %v816 = vsel %vm742, %v629, 0
    %818 = vmatprep.subr.mxu0 0.0
    %819 = vmatpush1.msra.mxu0 0.0
    %820 = vmatprep.subr.mxu0 0.0
    %821 = vmatpush1.msra.mxu0 0.0
    %822 = vmatprep.subr.mxu0 0.0
    %823 = vmatpush1.msra.mxu0 0.0
    %824 = vmatprep.subr.mxu0 0.0
    %825 = vmatpush1.msra.mxu0 0.0
    %826 = vmatprep.subr.mxu0 0.0
    %827 = vmatpush1.msra.mxu0 0.0
    %828 = vmatprep.subr.mxu0 0.0
    %829 = vmatpush1.msra.mxu0 0.0
    %830 = vmatprep.subr.mxu0 0.0
    %831 = vmatpush1.msra.mxu0 0.0
    %832 = vmatprep.subr.mxu0 0.0
    %833 = vmatpush1.msra.mxu0 0.0
    %834 = vmatprep.subr.mxu0 0.0
    %835 = vmatpush1.msra.mxu0 0.0
    %836 = vmatprep.subr.mxu0 0.0
    %837 = vmatpush1.msra.mxu0 0.0
    %838 = vmatprep.subr.mxu0 0.0
    %839 = vmatpush1.msra.mxu0 0.0
    %840 = vmatprep.subr.mxu0 0.0
    %841 = vmatpush1.msra.mxu0 0.0
    %842 = vmatprep.subr.mxu0 0.0
    %843 = vmatpush1.msra.mxu0 0.0
    %844 = vmatprep.subr.mxu0 0.0
    %845 = vmatpush1.msra.mxu0 %v734
    %846 = vmatprep.subr.mxu0 0.0
    %847 = vmatpush1.msra.mxu0 %v733
    %848 = vmatprep.subr.mxu0 0.0
    %849 = vmatpush1.msra.mxu0 %v732
    %850 = vmatprep.subr.mxu0 0.0
    %851 = vmatpush2.msra.mxu0 0.0
    %852 = vmatprep.subr.mxu0 0.0
    %853 = vmatpush2.msra.mxu0 0.0
    %854 = vmatprep.subr.mxu0 0.0
    %855 = vmatpush2.msra.mxu0 0.0
    %856 = vmatprep.subr.mxu0 0.0
    %857 = vmatpush2.msra.mxu0 0.0
    %858 = vmatprep.subr.mxu0 0.0
    %859 = vmatpush2.msra.mxu0 0.0
    %860 = vmatprep.subr.mxu0 0.0
    %861 = vmatpush2.msra.mxu0 0.0
    %862 = vmatprep.subr.mxu0 0.0
    %863 = vmatpush2.msra.mxu0 0.0
    %864 = vmatprep.subr.mxu0 0.0
    %865 = vmatpush2.msra.mxu0 0.0
    %866 = vmatprep.subr.mxu0 0.0
    %867 = vmatpush2.msra.mxu0 0.0
    %868 = vmatprep.subr.mxu0 0.0
    %869 = vmatpush2.msra.mxu0 0.0
    %870 = vmatprep.subr.mxu0 0.0
    %871 = vmatpush2.msra.mxu0 0.0
    %872 = vmatprep.subr.mxu0 0.0
    %873 = vmatpush2.msra.mxu0 0.0
    %874 = vmatprep.subr.mxu0 0.0
    %875 = vmatpush2.msra.mxu0 0.0
    %876 = vmatprep.subr.mxu0 0.0
    %877 = vmatpush2.msra.mxu0 0.0
    %878 = vmatprep.subr.mxu0 0.0
    %879 = vmatpush2.msra.mxu0 0.0
    %880 = vmatprep.subr.mxu0 0.0
    %881 = vmatpush2.msra.mxu0 0.0
    %882 = vmatprep.mubr.f32.mxu0 0.0
    %883 = vmatmul.mubr.f32.gmra.mxu0 %v816
    %v884 = vpop.f32.mrf.mxu0
    %v885 = vadd.f32 %v812, %v884
    %v886 = vpop.f32.mrf.mxu0
    %887 = vdwg.mxu0
    %v888 = vadd.f32 %v885, %v731
    %v889 = vld [vmem:[%s9] sm:$0x1]
    %v891 = vlaneseq
    %v892 = vshrl.u32 %v891, 7
    %v893 = vsub.s32 0, %v892
    %v894 = vrot.slane %v889, %v893
    %v896 = vadd.f32 %v888, %v894
    %v897 = vmax.f32 %v896, 0.0
    %v898 = vld [vmem:[%s10] sm:$0xff]
    %v899 = vld [vmem:[%s10 + $0x8] sm:$0xff]
    %v900 = vld [vmem:[%s10 + $0x10] sm:$0xff]
    %v901 = vld [vmem:[%s10 + $0x18] sm:$0xff]
    %v902 = vld [vmem:[%s10 + $0x20] sm:$0xff]
    %v903 = vld [vmem:[%s10 + $0x28] sm:$0xff]
    %v904 = vld [vmem:[%s10 + $0x30] sm:$0xff]
    %v905 = vld [vmem:[%s10 + $0x38] sm:$0xff]
    %v906 = vld [vmem:[%s11] sm:$0x1]
    %v908 = vlaneseq
    %v909 = vshrl.u32 %v908, 7
    %v910 = vsub.s32 0, %v909
    %v911 = vrot.slane %v906, %v910
    %v914 = vsel %vm320, %v897, 0
    %916 = vmatprep.subr.mxu0 0.0
    %917 = vmatpush1.msra.mxu0 0.0
    %918 = vmatprep.subr.mxu0 0.0
    %919 = vmatpush1.msra.mxu0 0.0
    %920 = vmatprep.subr.mxu0 0.0
    %921 = vmatpush1.msra.mxu0 0.0
    %922 = vmatprep.subr.mxu0 0.0
    %923 = vmatpush1.msra.mxu0 0.0
    %924 = vmatprep.subr.mxu0 0.0
    %925 = vmatpush1.msra.mxu0 0.0
    %926 = vmatprep.subr.mxu0 0.0
    %927 = vmatpush1.msra.mxu0 0.0
    %928 = vmatprep.subr.mxu0 0.0
    %929 = vmatpush1.msra.mxu0 0.0
    %930 = vmatprep.subr.mxu0 0.0
    %931 = vmatpush1.msra.mxu0 0.0
    %932 = vmatprep.subr.mxu0 0.0
    %933 = vmatpush1.msra.mxu0 %v905
    %934 = vmatprep.subr.mxu0 0.0
    %935 = vmatpush1.msra.mxu0 %v904
    %936 = vmatprep.subr.mxu0 0.0
    %937 = vmatpush1.msra.mxu0 %v903
    %938 = vmatprep.subr.mxu0 0.0
    %939 = vmatpush1.msra.mxu0 %v902
    %940 = vmatprep.subr.mxu0 0.0
    %941 = vmatpush1.msra.mxu0 %v901
    %942 = vmatprep.subr.mxu0 0.0
    %943 = vmatpush1.msra.mxu0 %v900
    %944 = vmatprep.subr.mxu0 0.0
    %945 = vmatpush1.msra.mxu0 %v899
    %946 = vmatprep.subr.mxu0 0.0
    %947 = vmatpush1.msra.mxu0 %v898
    %948 = vmatprep.subr.mxu0 0.0
    %949 = vmatpush2.msra.mxu0 0.0
    %950 = vmatprep.subr.mxu0 0.0
    %951 = vmatpush2.msra.mxu0 0.0
    %952 = vmatprep.subr.mxu0 0.0
    %953 = vmatpush2.msra.mxu0 0.0
    %954 = vmatprep.subr.mxu0 0.0
    %955 = vmatpush2.msra.mxu0 0.0
    %956 = vmatprep.subr.mxu0 0.0
    %957 = vmatpush2.msra.mxu0 0.0
    %958 = vmatprep.subr.mxu0 0.0
    %959 = vmatpush2.msra.mxu0 0.0
    %960 = vmatprep.subr.mxu0 0.0
    %961 = vmatpush2.msra.mxu0 0.0
    %962 = vmatprep.subr.mxu0 0.0
    %963 = vmatpush2.msra.mxu0 0.0
    %964 = vmatprep.subr.mxu0 0.0
    %965 = vmatpush2.msra.mxu0 0.0
    %966 = vmatprep.subr.mxu0 0.0
    %967 = vmatpush2.msra.mxu0 0.0
    %968 = vmatprep.subr.mxu0 0.0
    %969 = vmatpush2.msra.mxu0 0.0
    %970 = vmatprep.subr.mxu0 0.0
    %971 = vmatpush2.msra.mxu0 0.0
    %972 = vmatprep.subr.mxu0 0.0
    %973 = vmatpush2.msra.mxu0 0.0
    %974 = vmatprep.subr.mxu0 0.0
    %975 = vmatpush2.msra.mxu0 0.0
    %976 = vmatprep.subr.mxu0 0.0
    %977 = vmatpush2.msra.mxu0 0.0
    %978 = vmatprep.subr.mxu0 0.0
    %979 = vmatpush2.msra.mxu0 0.0
    %980 = vmatprep.mubr.f32.mxu0 0.0
    %981 = vmatmul.mubr.f32.gmra.mxu0 %v914
    %v982 = vpop.f32.mrf.mxu0
    %v983 = vadd.f32 %v911, %v982
    %v984 = vpop.f32.mrf.mxu0
    %985 = vdwg.mxu0
    %v986 = vmax.f32 %v983, 0.0
    %v988 = vcombine.high %v986, %v986
    %v990 = vunpack.c.l.s4 1983009808
    %v991 = vunpack.c.0.s8 %v990
    %v992 = vlaneseq
    %v993 = vshrl.u32 %v992, 7
    %v994 = vsub.s32 %v991, %v993
    %v995 = vrot.slane %v986, %v994
    %v997 = vunpack.c.l.s4 1983009808
    %v998 = vunpack.c.0.s8 %v997
    %v999 = vlaneseq
    %v1000 = vshrl.u32 %v999, 7
    %v1001 = vsub.s32 %v998, %v1000
    %v1002 = vrot.slane %v988, %v1001
    %v1003 = vcombine.high %v995, %v995
    %v1004 = vcombine.high %v1002, %v1002
    %vm1009 = vcmask 517120
    %v1010 = vsel %vm1009, %v995, 0.0
    %v1011 = vsel %vm1009, %v1003, 0.0
    %v1012 = vadd.f32 %v1010, %v1011
    %v1013 = vsel %vm1009, %v1002, 0.0
    %v1014 = vadd.f32 %v1012, %v1013
    %v1015 = vsel %vm1009, %v1004, 0.0
    %v1016 = vadd.f32 %v1014, %v1015
    %s1017 = scalar_lea.vmem %s10, 64
    %v1018 = vld [vmem:[%s1017] sm:$0xff]
    %v1019 = vld [vmem:[%s1017 + $0x8] sm:$0xff]
    %v1020 = vld [vmem:[%s1017 + $0x10] sm:$0xff]
    %v1021 = vld [vmem:[%s1017 + $0x18] sm:$0xff]
    %v1022 = vld [vmem:[%s1017 + $0x20] sm:$0xff]
    %v1023 = vld [vmem:[%s1017 + $0x28] sm:$0xff]
    %v1024 = vld [vmem:[%s1017 + $0x30] sm:$0xff]
    %v1025 = vld [vmem:[%s1017 + $0x38] sm:$0xff]
    %s1026 = scalar_lea.vmem %s11, 1
    %v1027 = vld [vmem:[%s1026] sm:$0x1]
    %v1029 = vlaneseq
    %v1030 = vshrl.u32 %v1029, 7
    %v1031 = vsub.s32 0, %v1030
    %v1032 = vrot.slane %v1027, %v1031
    %v1035 = vsel %vm320, %v1016, 0
    %1037 = vmatprep.subr.mxu0 0.0
    %1038 = vmatpush1.msra.mxu0 0.0
    %1039 = vmatprep.subr.mxu0 0.0
    %1040 = vmatpush1.msra.mxu0 0.0
    %1041 = vmatprep.subr.mxu0 0.0
    %1042 = vmatpush1.msra.mxu0 0.0
    %1043 = vmatprep.subr.mxu0 0.0
    %1044 = vmatpush1.msra.mxu0 0.0
    %1045 = vmatprep.subr.mxu0 0.0
    %1046 = vmatpush1.msra.mxu0 0.0
    %1047 = vmatprep.subr.mxu0 0.0
    %1048 = vmatpush1.msra.mxu0 0.0
    %1049 = vmatprep.subr.mxu0 0.0
    %1050 = vmatpush1.msra.mxu0 0.0
    %1051 = vmatprep.subr.mxu0 0.0
    %1052 = vmatpush1.msra.mxu0 0.0
    %1053 = vmatprep.subr.mxu0 0.0
    %1054 = vmatpush1.msra.mxu0 %v1025
    %1055 = vmatprep.subr.mxu0 0.0
    %1056 = vmatpush1.msra.mxu0 %v1024
    %1057 = vmatprep.subr.mxu0 0.0
    %1058 = vmatpush1.msra.mxu0 %v1023
    %1059 = vmatprep.subr.mxu0 0.0
    %1060 = vmatpush1.msra.mxu0 %v1022
    %1061 = vmatprep.subr.mxu0 0.0
    %1062 = vmatpush1.msra.mxu0 %v1021
    %1063 = vmatprep.subr.mxu0 0.0
    %1064 = vmatpush1.msra.mxu0 %v1020
    %1065 = vmatprep.subr.mxu0 0.0
    %1066 = vmatpush1.msra.mxu0 %v1019
    %1067 = vmatprep.subr.mxu0 0.0
    %1068 = vmatpush1.msra.mxu0 %v1018
    %1069 = vmatprep.subr.mxu0 0.0
    %1070 = vmatpush2.msra.mxu0 0.0
    %1071 = vmatprep.subr.mxu0 0.0
    %1072 = vmatpush2.msra.mxu0 0.0
    %1073 = vmatprep.subr.mxu0 0.0
    %1074 = vmatpush2.msra.mxu0 0.0
    %1075 = vmatprep.subr.mxu0 0.0
    %1076 = vmatpush2.msra.mxu0 0.0
    %1077 = vmatprep.subr.mxu0 0.0
    %1078 = vmatpush2.msra.mxu0 0.0
    %1079 = vmatprep.subr.mxu0 0.0
    %1080 = vmatpush2.msra.mxu0 0.0
    %1081 = vmatprep.subr.mxu0 0.0
    %1082 = vmatpush2.msra.mxu0 0.0
    %1083 = vmatprep.subr.mxu0 0.0
    %1084 = vmatpush2.msra.mxu0 0.0
    %1085 = vmatprep.subr.mxu0 0.0
    %1086 = vmatpush2.msra.mxu0 0.0
    %1087 = vmatprep.subr.mxu0 0.0
    %1088 = vmatpush2.msra.mxu0 0.0
    %1089 = vmatprep.subr.mxu0 0.0
    %1090 = vmatpush2.msra.mxu0 0.0
    %1091 = vmatprep.subr.mxu0 0.0
    %1092 = vmatpush2.msra.mxu0 0.0
    %1093 = vmatprep.subr.mxu0 0.0
    %1094 = vmatpush2.msra.mxu0 0.0
    %1095 = vmatprep.subr.mxu0 0.0
    %1096 = vmatpush2.msra.mxu0 0.0
    %1097 = vmatprep.subr.mxu0 0.0
    %1098 = vmatpush2.msra.mxu0 0.0
    %1099 = vmatprep.subr.mxu0 0.0
    %1100 = vmatpush2.msra.mxu0 0.0
    %1101 = vmatprep.mubr.f32.mxu0 0.0
    %1102 = vmatmul.mubr.f32.gmra.mxu0 %v1035
    %v1103 = vpop.f32.mrf.mxu0
    %v1104 = vadd.f32 %v1032, %v1103
    %v1105 = vpop.f32.mrf.mxu0
    %1106 = vdwg.mxu0
    %v1107 = vmax.f32 %v1104, 0.0
    %v1108 = vld [vmem:[%s12] sm:$0xff]
    %v1109 = vld [vmem:[%s12 + $0x8] sm:$0xff]
    %v1110 = vld [vmem:[%s12 + $0x10] sm:$0xff]
    %v1111 = vld [vmem:[%s12 + $0x18] sm:$0xff]
    %v1112 = vld [vmem:[%s12 + $0x20] sm:$0xff]
    %v1113 = vld [vmem:[%s12 + $0x28] sm:$0xff]
    %v1114 = vld [vmem:[%s12 + $0x30] sm:$0xff]
    %v1115 = vld [vmem:[%s12 + $0x38] sm:$0xff]
    %v1116 = vld [vmem:[%s13] sm:$0x1]
    %v1118 = vlaneseq
    %v1119 = vshrl.u32 %v1118, 7
    %v1120 = vsub.s32 0, %v1119
    %v1121 = vrot.slane %v1116, %v1120
    %v1124 = vsel %vm320, %v1107, 0
    %1126 = vmatprep.subr.mxu0 0.0
    %1127 = vmatpush1.msra.mxu0 0.0
    %1128 = vmatprep.subr.mxu0 0.0
    %1129 = vmatpush1.msra.mxu0 0.0
    %1130 = vmatprep.subr.mxu0 0.0
    %1131 = vmatpush1.msra.mxu0 0.0
    %1132 = vmatprep.subr.mxu0 0.0
    %1133 = vmatpush1.msra.mxu0 0.0
    %1134 = vmatprep.subr.mxu0 0.0
    %1135 = vmatpush1.msra.mxu0 0.0
    %1136 = vmatprep.subr.mxu0 0.0
    %1137 = vmatpush1.msra.mxu0 0.0
    %1138 = vmatprep.subr.mxu0 0.0
    %1139 = vmatpush1.msra.mxu0 0.0
    %1140 = vmatprep.subr.mxu0 0.0
    %1141 = vmatpush1.msra.mxu0 0.0
    %1142 = vmatprep.subr.mxu0 0.0
    %1143 = vmatpush1.msra.mxu0 %v1115
    %1144 = vmatprep.subr.mxu0 0.0
    %1145 = vmatpush1.msra.mxu0 %v1114
    %1146 = vmatprep.subr.mxu0 0.0
    %1147 = vmatpush1.msra.mxu0 %v1113
    %1148 = vmatprep.subr.mxu0 0.0
    %1149 = vmatpush1.msra.mxu0 %v1112
    %1150 = vmatprep.subr.mxu0 0.0
    %1151 = vmatpush1.msra.mxu0 %v1111
    %1152 = vmatprep.subr.mxu0 0.0
    %1153 = vmatpush1.msra.mxu0 %v1110
    %1154 = vmatprep.subr.mxu0 0.0
    %1155 = vmatpush1.msra.mxu0 %v1109
    %1156 = vmatprep.subr.mxu0 0.0
    %1157 = vmatpush1.msra.mxu0 %v1108
    %1158 = vmatprep.subr.mxu0 0.0
    %1159 = vmatpush2.msra.mxu0 0.0
    %1160 = vmatprep.subr.mxu0 0.0
    %1161 = vmatpush2.msra.mxu0 0.0
    %1162 = vmatprep.subr.mxu0 0.0
    %1163 = vmatpush2.msra.mxu0 0.0
    %1164 = vmatprep.subr.mxu0 0.0
    %1165 = vmatpush2.msra.mxu0 0.0
    %1166 = vmatprep.subr.mxu0 0.0
    %1167 = vmatpush2.msra.mxu0 0.0
    %1168 = vmatprep.subr.mxu0 0.0
    %1169 = vmatpush2.msra.mxu0 0.0
    %1170 = vmatprep.subr.mxu0 0.0
    %1171 = vmatpush2.msra.mxu0 0.0
    %1172 = vmatprep.subr.mxu0 0.0
    %1173 = vmatpush2.msra.mxu0 0.0
    %1174 = vmatprep.subr.mxu0 0.0
    %1175 = vmatpush2.msra.mxu0 0.0
    %1176 = vmatprep.subr.mxu0 0.0
    %1177 = vmatpush2.msra.mxu0 0.0
    %1178 = vmatprep.subr.mxu0 0.0
    %1179 = vmatpush2.msra.mxu0 0.0
    %1180 = vmatprep.subr.mxu0 0.0
    %1181 = vmatpush2.msra.mxu0 0.0
    %1182 = vmatprep.subr.mxu0 0.0
    %1183 = vmatpush2.msra.mxu0 0.0
    %1184 = vmatprep.subr.mxu0 0.0
    %1185 = vmatpush2.msra.mxu0 0.0
    %1186 = vmatprep.subr.mxu0 0.0
    %1187 = vmatpush2.msra.mxu0 0.0
    %1188 = vmatprep.subr.mxu0 0.0
    %1189 = vmatpush2.msra.mxu0 0.0
    %1190 = vmatprep.mubr.f32.mxu0 0.0
    %1191 = vmatmul.mubr.f32.gmra.mxu0 %v1124
    %v1192 = vpop.f32.mrf.mxu0
    %v1193 = vadd.f32 %v1121, %v1192
    %v1194 = vpop.f32.mrf.mxu0
    %1195 = vdwg.mxu0
    %v1196 = vmax.f32 %v1193, 0.0
    %v1197 = vld [vmem:[%s14] sm:$0xff]
    %v1198 = vld [vmem:[%s14 + $0x8] sm:$0xff]
    %v1199 = vld [vmem:[%s14 + $0x10] sm:$0xff]
    %v1200 = vld [vmem:[%s14 + $0x18] sm:$0xff]
    %v1201 = vld [vmem:[%s15] sm:$0x1]
    %v1203 = vlaneseq
    %v1204 = vshrl.u32 %v1203, 7
    %v1205 = vsub.s32 0, %v1204
    %v1206 = vrot.slane %v1201, %v1205
    %v1209 = vsel %vm310, %v1196, 0
    %1211 = vmatprep.subr.mxu0 0.0
    %1212 = vmatpush1.msra.mxu0 0.0
    %1213 = vmatprep.subr.mxu0 0.0
    %1214 = vmatpush1.msra.mxu0 0.0
    %1215 = vmatprep.subr.mxu0 0.0
    %1216 = vmatpush1.msra.mxu0 0.0
    %1217 = vmatprep.subr.mxu0 0.0
    %1218 = vmatpush1.msra.mxu0 0.0
    %1219 = vmatprep.subr.mxu0 0.0
    %1220 = vmatpush1.msra.mxu0 0.0
    %1221 = vmatprep.subr.mxu0 0.0
    %1222 = vmatpush1.msra.mxu0 0.0
    %1223 = vmatprep.subr.mxu0 0.0
    %1224 = vmatpush1.msra.mxu0 0.0
    %1225 = vmatprep.subr.mxu0 0.0
    %1226 = vmatpush1.msra.mxu0 0.0
    %1227 = vmatprep.subr.mxu0 0.0
    %1228 = vmatpush1.msra.mxu0 0.0
    %1229 = vmatprep.subr.mxu0 0.0
    %1230 = vmatpush1.msra.mxu0 0.0
    %1231 = vmatprep.subr.mxu0 0.0
    %1232 = vmatpush1.msra.mxu0 0.0
    %1233 = vmatprep.subr.mxu0 0.0
    %1234 = vmatpush1.msra.mxu0 0.0
    %1235 = vmatprep.subr.mxu0 0.0
    %1236 = vmatpush1.msra.mxu0 %v1200
    %1237 = vmatprep.subr.mxu0 0.0
    %1238 = vmatpush1.msra.mxu0 %v1199
    %1239 = vmatprep.subr.mxu0 0.0
    %1240 = vmatpush1.msra.mxu0 %v1198
    %1241 = vmatprep.subr.mxu0 0.0
    %1242 = vmatpush1.msra.mxu0 %v1197
    %1243 = vmatprep.subr.mxu0 0.0
    %1244 = vmatpush2.msra.mxu0 0.0
    %1245 = vmatprep.subr.mxu0 0.0
    %1246 = vmatpush2.msra.mxu0 0.0
    %1247 = vmatprep.subr.mxu0 0.0
    %1248 = vmatpush2.msra.mxu0 0.0
    %1249 = vmatprep.subr.mxu0 0.0
    %1250 = vmatpush2.msra.mxu0 0.0
    %1251 = vmatprep.subr.mxu0 0.0
    %1252 = vmatpush2.msra.mxu0 0.0
    %1253 = vmatprep.subr.mxu0 0.0
    %1254 = vmatpush2.msra.mxu0 0.0
    %1255 = vmatprep.subr.mxu0 0.0
    %1256 = vmatpush2.msra.mxu0 0.0
    %1257 = vmatprep.subr.mxu0 0.0
    %1258 = vmatpush2.msra.mxu0 0.0
    %1259 = vmatprep.subr.mxu0 0.0
    %1260 = vmatpush2.msra.mxu0 0.0
    %1261 = vmatprep.subr.mxu0 0.0
    %1262 = vmatpush2.msra.mxu0 0.0
    %1263 = vmatprep.subr.mxu0 0.0
    %1264 = vmatpush2.msra.mxu0 0.0
    %1265 = vmatprep.subr.mxu0 0.0
    %1266 = vmatpush2.msra.mxu0 0.0
    %1267 = vmatprep.subr.mxu0 0.0
    %1268 = vmatpush2.msra.mxu0 0.0
    %1269 = vmatprep.subr.mxu0 0.0
    %1270 = vmatpush2.msra.mxu0 0.0
    %1271 = vmatprep.subr.mxu0 0.0
    %1272 = vmatpush2.msra.mxu0 0.0
    %1273 = vmatprep.subr.mxu0 0.0
    %1274 = vmatpush2.msra.mxu0 0.0
    %1275 = vmatprep.mubr.f32.mxu0 0.0
    %1276 = vmatmul.mubr.f32.gmra.mxu0 %v1209
    %v1277 = vpop.f32.mrf.mxu0
    %v1278 = vadd.f32 %v1206, %v1277
    %v1279 = vpop.f32.mrf.mxu0
    %1280 = vdwg.mxu0
    %1281 = vst [vmem:[#allocation2] sm:$0x3] %v1278
    // Predicated region
    $region66: #{mckn_forward.1} parent=1 // pred_check
      _
    $region67: #{mckn_forward.1} parent=1 // pred_check_branch
      %1283 = sbr.rel (0) target = $region69
    $region68: #{mckn_forward.1} parent=1 // pred_region
      %s1285 = ssub.s32 32, 32
      %1286 = vsyncadd [#allocation3], %s1285
      %s1288 = sshll.u32 [#allocation2], 4
      %s1289 = int_to_ptr.vmem [resolvable:$true] %s1288
      %1291 = dma.vmem_to_hbm [thread:$0]  %s1289, 32, %s16, [#allocation3]
    $region69: #{mckn_forward.1} parent=1 // pred_fallthru
      _
    // Predicated region
    $region70: #{mckn_forward.1} parent=1 // pred_check
      _
    $region71: #{mckn_forward.1} parent=1 // pred_check_branch
      %1293 = sbr.rel (0) target = $region73
    $region72: #{mckn_forward.1} parent=1 // pred_region
      %1294 = dma.done [#allocation3], 32
    $region73: #{mckn_forward.1} parent=1 // pred_fallthru
      _
    %1295 = vsyncpa [#allocation3], 1

</llo_original>
